<compile_context>
chip_gen: v5e
topology: v5e:2x2
jax: 0.10.0
libtpu: 0.0.40
codegen_flags: <defaults>
</compile_context>

<pallas_src>
import functools

import numpy as np

import jax
import jax.numpy as jnp
from jax.experimental import pallas as pl
from jax.experimental.pallas import tpu as pltpu


def _round_up(x, m):
    return ((x + m - 1) // m) * m


def _rvq_kernel(z_ref, cb_ref, cbt_ref, e2h_ref,
                zqsum_ref, idx_ref, counts_ref, sse_ref, *, n_valid):
    """Fused residual-VQ over all layers for one (TN, D) tile of tokens."""
    tile = pl.program_id(0)
    residual = z_ref[...].astype(jnp.float32)                    # (TN, D)
    TN, D = residual.shape
    L, K, _ = cb_ref.shape

    # Row-validity mask for the (possibly) padded last tile.
    row_ids = jax.lax.broadcasted_iota(jnp.int32, (TN, 1), 0) + tile * TN
    valid = (row_ids < n_valid).astype(jnp.float32)              # (TN, 1)
    lane_iota = jax.lax.broadcasted_iota(jnp.int32, (TN, K), 1)  # (TN, K)

    zq_sum = jnp.zeros((TN, D), jnp.float32)

    for l in range(L):  # static, unrolled (L = 4)
        e = cb_ref[l]                                            # (K, D)
        e_t = cbt_ref[l]                                         # (D, K), pre-transposed
        e2h = e2h_ref[pl.ds(l, 1), :]                            # (1, K) = 0.5*||e_k||^2

        # argmin_k ||r - e_k||^2  ==  argmin_k (0.5*||e_k||^2 - r.e_k)
        cross = jnp.dot(residual, e_t, preferred_element_type=jnp.float32)  # (TN, K) on MXU
        d = e2h - cross
        d_min = jnp.min(d, axis=1, keepdims=True)                # (TN, 1)
        idx_col = jnp.min(jnp.where(d <= d_min, lane_iota, K),
                          axis=1, keepdims=True)                 # (TN, 1) first-occurrence

        # One-hot (masked so padded rows contribute nothing to zq / counts / sse).
        onehot = jnp.where(lane_iota == idx_col, valid, 0.0)     # (TN, K) f32
        zq = jnp.dot(onehot, e, preferred_element_type=jnp.float32)  # (TN, D) on MXU
        diff = zq - residual                                     # padded rows: 0 - 0

        idx_ref[:, pl.ds(l, 1)] = idx_col
        counts_ref[0, pl.ds(l, 1), :] = jnp.sum(onehot, axis=0, keepdims=True)   # (1, K)
        sse_ref[0, l] = jnp.sum(diff * diff).reshape(1, 1)

        zq_sum = zq_sum + zq
        residual = residual - zq

    zqsum_ref[...] = zq_sum


@functools.partial(jax.jit, static_argnames=("n_valid", "tile_n", "beta"))
def _rvq_forward(z_pad, cb, cb_t, e2h, *, n_valid, tile_n, beta):
    n_pad, d = z_pad.shape
    l_layers, k, _ = cb.shape
    num_tiles = n_pad // tile_n

    kernel = functools.partial(_rvq_kernel, n_valid=n_valid)

    out_shape = (
        jax.ShapeDtypeStruct((n_pad, d), jnp.float32),                   # z_q summed over layers
        jax.ShapeDtypeStruct((n_pad, l_layers), jnp.int32),              # per-layer indices
        jax.ShapeDtypeStruct((num_tiles, l_layers, k), jnp.float32),     # per-tile one-hot counts
        jax.ShapeDtypeStruct((num_tiles, l_layers, 1, 1), jnp.float32),  # per-tile sum sq error
    )

    zq_sum, idx_all, counts_t, sse_t = pl.pallas_call(
        kernel,
        out_shape=out_shape,
        grid=(num_tiles,),
        in_specs=[
            pl.BlockSpec((tile_n, d), lambda i: (i, 0)),           # z tile
            pl.BlockSpec((l_layers, k, d), lambda i: (0, 0, 0)),   # codebooks (resident)
            pl.BlockSpec((l_layers, d, k), lambda i: (0, 0, 0)),   # codebooks^T (resident)
            pl.BlockSpec((l_layers, k), lambda i: (0, 0)),         # 0.5*||e||^2 (resident)
        ],
        out_specs=(
            pl.BlockSpec((tile_n, d), lambda i: (i, 0)),
            pl.BlockSpec((tile_n, l_layers), lambda i: (i, 0)),
            pl.BlockSpec((1, l_layers, k), lambda i: (i, 0, 0)),
            pl.BlockSpec((1, l_layers, 1, 1), lambda i: (i, 0, 0, 0)),
        ),
        compiler_params=pltpu.CompilerParams(
            dimension_semantics=("parallel",),      # tiles are independent -> megacore on v7x
            vmem_limit_bytes=32 * 1024 * 1024,      # footprint ~4 MiB @ TN=512; fits v5e/v6e/v7x
        ),
    )(z_pad, cb, cb_t, e2h)

    counts = jnp.sum(counts_t, axis=0)                    # (L, K)
    sse = jnp.sum(sse_t, axis=0).reshape(l_layers)        # (L,)

    denom = float(n_valid * d)
    loss = jnp.sum(beta * sse / denom)                    # sum_l beta * mean((zq_l - r_l)^2)
    e_mean = counts / float(n_valid)
    perplexity = jnp.exp(-jnp.sum(e_mean * jnp.log(e_mean + 1e-10), axis=-1))  # (L,)
    return zq_sum, idx_all, loss, perplexity


class ResidualQuantizerPallas:
    """JAX/Pallas re-implementation of ResidualQuantizer's forward pass."""

    def __init__(self, n_e, e_dim, beta, layers=4, key=None):
        self.n_e = n_e
        self.e_dim = e_dim
        self.beta = float(beta)
        self.layers = layers
        if key is None:
            key = jax.random.PRNGKey(0)
        keys = jax.random.split(key, layers)
        # Deterministic init matching nn.Embedding.weight.uniform_(-1/n_e, 1/n_e)
        cbs = [jax.random.uniform(k, (n_e, e_dim), dtype=jnp.float32,
                                  minval=-1.0 / n_e, maxval=1.0 / n_e) for k in keys]
        self.codebooks = jnp.stack(cbs, axis=0)                        # (L, K, D)
        self.codebooks_t = jnp.transpose(self.codebooks, (0, 2, 1))    # (L, D, K)
        self.e2_half = 0.5 * jnp.sum(self.codebooks ** 2, axis=-1)     # (L, K)
        # TODO(synk): EMA buffers N_t / m_t (torch.unique-based in-place training-time
        # updates) are not reproduced; they do not affect the forward outputs.

    def __call__(self, z):
        assert z.shape[-1] == self.e_dim
        orig_shape = z.shape
        N = int(np.prod(orig_shape[:-1]))
        z_flat = jnp.reshape(z, (N, self.e_dim)).astype(jnp.float32)

        # Tile the flattened token axis; TN multiple of 8 sublanes, capped at 512.
        tile_n = min(512, _round_up(N, 8))
        n_pad = _round_up(N, tile_n)
        if n_pad != N:
            z_flat = jnp.pad(z_flat, ((0, n_pad - N), (0, 0)))

        zq_sum, idx_all, loss, ppl = _rvq_forward(
            z_flat, self.codebooks, self.codebooks_t, self.e2_half,
            n_valid=N, tile_n=tile_n, beta=self.beta)

        z_q = zq_sum[:N].reshape(orig_shape)
        indices = [idx_all[:N, l] for l in range(self.layers)]
        perplexities = [ppl[l] for l in range(self.layers)]
        return loss, z_q, indices, perplexities


if __name__ == "__main__":
    key = jax.random.PRNGKey(0)
    k_model, k_data = jax.random.split(key)

    n_e = 256      # codebook size
    e_dim = 128    # embedding dim
    beta = 0.25
    layers = 4
    B, T = 2, 8    # -> N = 16 flattened vectors

    rvq = ResidualQuantizerPallas(n_e, e_dim, beta, layers=layers, key=k_model)
    z = jax.random.normal(k_data, (B, T, e_dim), dtype=jnp.float32)

    loss, z_q, indices_list, ppl_list = rvq(z)
    jax.block_until_ready(loss)
    jax.block_until_ready(z_q)
    for idx in indices_list:
        jax.block_until_ready(idx)
    for p in ppl_list:
        jax.block_until_ready(p)

    assert z_q.shape == z.shape
    assert len(indices_list) == layers and len(ppl_list) == layers
    assert all(ix.shape == (B * T,) for ix in indices_list)
    print("KERNEL_OK")
</pallas_src>

<mosaic_0001>
module attributes {stable_mosaic.version = 11 : i64} {
  func.func @_rvq_kernel(%arg0: i32, %arg1: memref<16x128xf32, #tpu.memory_space<vmem>>, %arg2: memref<4x256x128xf32, #tpu.memory_space<vmem>>, %arg3: memref<4x128x256xf32, #tpu.memory_space<vmem>>, %arg4: memref<4x256xf32, #tpu.memory_space<vmem>>, %arg5: memref<16x128xf32, #tpu.memory_space<vmem>>, %arg6: memref<16x4xi32, #tpu.memory_space<vmem>>, %arg7: memref<1x4x256xf32, #tpu.memory_space<vmem>>, %arg8: memref<1x4x1x1xf32, #tpu.memory_space<vmem>>) attributes {dimension_semantics = [#tpu.dimension_semantics<parallel>], iteration_bounds = array<i64: 1>, scalar_prefetch = 0 : i64, scratch_operands = 0 : i64, tpu.core_type = #tpu.core_type<tc>, window_params = [{transform_indices = @transform_0, window_bounds = array<i64: 16, 128>}, {pipeline_mode = #tpu.pipeline_mode<synchronous>, transform_indices = @transform_1, window_bounds = array<i64: 4, 256, 128>}, {pipeline_mode = #tpu.pipeline_mode<synchronous>, transform_indices = @transform_2, window_bounds = array<i64: 4, 128, 256>}, {pipeline_mode = #tpu.pipeline_mode<synchronous>, transform_indices = @transform_3, window_bounds = array<i64: 4, 256>}, {transform_indices = @transform_4, window_bounds = array<i64: 16, 128>}, {transform_indices = @transform_5, window_bounds = array<i64: 16, 4>}, {transform_indices = @transform_6, window_bounds = array<i64: 1, 4, 256>}, {transform_indices = @transform_7, window_bounds = array<i64: 1, 4, 1, 1>}]} {
    %c0 = arith.constant 0 : index
    %c0_0 = arith.constant 0 : index
    %0 = vector.load %arg1[%c0, %c0_0] : memref<16x128xf32, #tpu.memory_space<vmem>>, vector<16x128xf32>
    %1 = tpu.iota {dimensions = array<i32: 0>} : vector<16x1xi32>
    %c16_i32 = arith.constant 16 : i32
    %2 = arith.muli %arg0, %c16_i32 : i32
    %3 = vector.broadcast %2 : i32 to vector<16x1xi32>
    %4 = arith.addi %1, %3 : vector<16x1xi32>
    %c16_i32_1 = arith.constant 16 : i32
    %5 = vector.broadcast %c16_i32_1 : i32 to vector<16x1xi32>
    %6 = arith.cmpi slt, %4, %5 : vector<16x1xi32>
    %7 = arith.extui %6 : vector<16x1xi1> to vector<16x1xi32>
    %8 = arith.sitofp %7 : vector<16x1xi32> to vector<16x1xf32>
    %9 = tpu.iota {dimensions = array<i32: 1>} : vector<16x256xi32>
    %cst = arith.constant 0.000000e+00 : f32
    %10 = vector.broadcast %cst : f32 to vector<16x128xf32>
    %c0_2 = arith.constant 0 : index
    %c0_3 = arith.constant 0 : index
    %c0_4 = arith.constant 0 : index
    %11 = vector.load %arg2[%c0_2, %c0_3, %c0_4] : memref<4x256x128xf32, #tpu.memory_space<vmem>>, vector<1x256x128xf32>
    %12 = vector.shape_cast %11 : vector<1x256x128xf32> to vector<256x128xf32>
    %c0_5 = arith.constant 0 : index
    %c0_6 = arith.constant 0 : index
    %c0_7 = arith.constant 0 : index
    %13 = vector.load %arg3[%c0_5, %c0_6, %c0_7] : memref<4x128x256xf32, #tpu.memory_space<vmem>>, vector<1x128x256xf32>
    %14 = vector.shape_cast %13 : vector<1x128x256xf32> to vector<128x256xf32>
    %c0_8 = arith.constant 0 : index
    %c0_9 = arith.constant 0 : index
    %15 = vector.load %arg4[%c0_8, %c0_9] : memref<4x256xf32, #tpu.memory_space<vmem>>, vector<1x256xf32>
    %cst_10 = arith.constant dense<0.000000e+00> : vector<16x256xf32>
    %16 = tpu.matmul %0, %14, %cst_10 {dimension_numbers = #tpu.dot_dimension_numbers<[1], [0], [0], [1], [0, 0, 1, 1], [], []>} : vector<16x128xf32>, vector<128x256xf32>, vector<16x256xf32> -> vector<16x256xf32>
    %17 = vector.broadcast %15 : vector<1x256xf32> to vector<16x256xf32>
    %18 = arith.subf %17, %16 : vector<16x256xf32>
    %cst_11 = arith.constant dense<0x7F800000> : vector<16xf32>
    %19 = vector.multi_reduction <minimumf>, %18, %cst_11 [1] : vector<16x256xf32> to vector<16xf32>
    %20 = vector.shape_cast %19 : vector<16xf32> to vector<16x1xf32>
    %21 = vector.broadcast %20 : vector<16x1xf32> to vector<16x256xf32>
    %22 = arith.cmpf ole, %18, %21 : vector<16x256xf32>
    %c256_i32 = arith.constant 256 : i32
    %23 = vector.broadcast %c256_i32 : i32 to vector<16x256xi32>
    %24 = arith.select %22, %9, %23 : vector<16x256xi1>, vector<16x256xi32>
    %cst_12 = arith.constant dense<2147483647> : vector<16xi32>
    %25 = vector.multi_reduction <minsi>, %24, %cst_12 [1] : vector<16x256xi32> to vector<16xi32>
    %26 = vector.shape_cast %25 : vector<16xi32> to vector<16x1xi32>
    %27 = vector.broadcast %26 : vector<16x1xi32> to vector<16x256xi32>
    %28 = arith.cmpi eq, %9, %27 : vector<16x256xi32>
    %cst_13 = arith.constant 0.000000e+00 : f32
    %29 = vector.shape_cast %8 : vector<16x1xf32> to vector<16x1xf32>
    %30 = vector.broadcast %29 : vector<16x1xf32> to vector<16x256xf32>
    %31 = vector.broadcast %cst_13 : f32 to vector<16x256xf32>
    %32 = arith.select %28, %30, %31 : vector<16x256xi1>, vector<16x256xf32>
    %cst_14 = arith.constant dense<0.000000e+00> : vector<16x128xf32>
    %33 = tpu.matmul %32, %12, %cst_14 {dimension_numbers = #tpu.dot_dimension_numbers<[1], [0], [0], [1], [0, 0, 1, 1], [], []>} : vector<16x256xf32>, vector<256x128xf32>, vector<16x128xf32> -> vector<16x128xf32>
    %34 = arith.subf %33, %0 : vector<16x128xf32>
    %c0_15 = arith.constant 0 : index
    %c0_16 = arith.constant 0 : index
    %35 = vector.load %arg6[%c0_15, %c0_16] : memref<16x4xi32, #tpu.memory_space<vmem>>, vector<16x1xi32>
    tpu.vector_store %arg6[%c0_15, %c0_16], %26 {strides = array<i32>} : memref<16x4xi32, #tpu.memory_space<vmem>>, vector<16x1xi32>,
    %cst_17 = arith.constant dense<0.000000e+00> : vector<256xf32>
    %36 = vector.multi_reduction <add>, %32, %cst_17 [0] : vector<16x256xf32> to vector<256xf32>
    %37 = vector.shape_cast %36 : vector<256xf32> to vector<1x256xf32>
    %c0_18 = arith.constant 0 : index
    %c0_19 = arith.constant 0 : index
    %c0_20 = arith.constant 0 : index
    %38 = vector.load %arg7[%c0_18, %c0_19, %c0_20] : memref<1x4x256xf32, #tpu.memory_space<vmem>>, vector<1x1x256xf32>
    %39 = vector.shape_cast %38 : vector<1x1x256xf32> to vector<1x256xf32>
    %40 = vector.shape_cast %37 : vector<1x256xf32> to vector<1x1x256xf32>
    tpu.vector_store %arg7[%c0_18, %c0_19, %c0_20], %40 {strides = array<i32>} : memref<1x4x256xf32, #tpu.memory_space<vmem>>, vector<1x1x256xf32>,
    %41 = arith.mulf %34, %34 : vector<16x128xf32>
    %42 = vector.shape_cast %41 : vector<16x128xf32> to vector<1x16x128xf32>
    %cst_21 = arith.constant dense<0.000000e+00> : vector<1xf32>
    %43 = vector.multi_reduction <add>, %42, %cst_21 [1, 2] : vector<1x16x128xf32> to vector<1xf32>
    %44 = vector.shape_cast %43 : vector<1xf32> to vector<1x1x1xf32>
    %45 = vector.extract %44[0, 0, 0] : f32 from vector<1x1x1xf32>
    %46 = vector.broadcast %45 : f32 to vector<1x1xf32>
    %c0_22 = arith.constant 0 : index
    %c0_23 = arith.constant 0 : index
    %c0_24 = arith.constant 0 : index
    %c0_25 = arith.constant 0 : index
    %47 = vector.load %arg8[%c0_22, %c0_23, %c0_24, %c0_25] : memref<1x4x1x1xf32, #tpu.memory_space<vmem>>, vector<1x1x1x1xf32>
    %48 = vector.shape_cast %47 : vector<1x1x1x1xf32> to vector<1x1xf32>
    %49 = vector.shape_cast %46 : vector<1x1xf32> to vector<1x1x1x1xf32>
    tpu.vector_store %arg8[%c0_22, %c0_23, %c0_24, %c0_25], %49 {strides = array<i32>} : memref<1x4x1x1xf32, #tpu.memory_space<vmem>>, vector<1x1x1x1xf32>,
    %50 = arith.addf %10, %33 : vector<16x128xf32>
    %51 = arith.subf %0, %33 : vector<16x128xf32>
    %c1 = arith.constant 1 : index
    %c0_26 = arith.constant 0 : index
    %c0_27 = arith.constant 0 : index
    %52 = vector.load %arg2[%c1, %c0_26, %c0_27] : memref<4x256x128xf32, #tpu.memory_space<vmem>>, vector<1x256x128xf32>
    %53 = vector.shape_cast %52 : vector<1x256x128xf32> to vector<256x128xf32>
    %c1_28 = arith.constant 1 : index
    %c0_29 = arith.constant 0 : index
    %c0_30 = arith.constant 0 : index
    %54 = vector.load %arg3[%c1_28, %c0_29, %c0_30] : memref<4x128x256xf32, #tpu.memory_space<vmem>>, vector<1x128x256xf32>
    %55 = vector.shape_cast %54 : vector<1x128x256xf32> to vector<128x256xf32>
    %c1_31 = arith.constant 1 : index
    %c0_32 = arith.constant 0 : index
    %56 = vector.load %arg4[%c1_31, %c0_32] : memref<4x256xf32, #tpu.memory_space<vmem>>, vector<1x256xf32>
    %cst_33 = arith.constant dense<0.000000e+00> : vector<16x256xf32>
    %57 = tpu.matmul %51, %55, %cst_33 {dimension_numbers = #tpu.dot_dimension_numbers<[1], [0], [0], [1], [0, 0, 1, 1], [], []>} : vector<16x128xf32>, vector<128x256xf32>, vector<16x256xf32> -> vector<16x256xf32>
    %58 = vector.broadcast %56 : vector<1x256xf32> to vector<16x256xf32>
    %59 = arith.subf %58, %57 : vector<16x256xf32>
    %cst_34 = arith.constant dense<0x7F800000> : vector<16xf32>
    %60 = vector.multi_reduction <minimumf>, %59, %cst_34 [1] : vector<16x256xf32> to vector<16xf32>
    %61 = vector.shape_cast %60 : vector<16xf32> to vector<16x1xf32>
    %62 = vector.broadcast %61 : vector<16x1xf32> to vector<16x256xf32>
    %63 = arith.cmpf ole, %59, %62 : vector<16x256xf32>
    %c256_i32_35 = arith.constant 256 : i32
    %64 = vector.broadcast %c256_i32_35 : i32 to vector<16x256xi32>
    %65 = arith.select %63, %9, %64 : vector<16x256xi1>, vector<16x256xi32>
    %cst_36 = arith.constant dense<2147483647> : vector<16xi32>
    %66 = vector.multi_reduction <minsi>, %65, %cst_36 [1] : vector<16x256xi32> to vector<16xi32>
    %67 = vector.shape_cast %66 : vector<16xi32> to vector<16x1xi32>
    %68 = vector.broadcast %67 : vector<16x1xi32> to vector<16x256xi32>
    %69 = arith.cmpi eq, %9, %68 : vector<16x256xi32>
    %cst_37 = arith.constant 0.000000e+00 : f32
    %70 = vector.shape_cast %8 : vector<16x1xf32> to vector<16x1xf32>
    %71 = vector.broadcast %70 : vector<16x1xf32> to vector<16x256xf32>
    %72 = vector.broadcast %cst_37 : f32 to vector<16x256xf32>
    %73 = arith.select %69, %71, %72 : vector<16x256xi1>, vector<16x256xf32>
    %cst_38 = arith.constant dense<0.000000e+00> : vector<16x128xf32>
    %74 = tpu.matmul %73, %53, %cst_38 {dimension_numbers = #tpu.dot_dimension_numbers<[1], [0], [0], [1], [0, 0, 1, 1], [], []>} : vector<16x256xf32>, vector<256x128xf32>, vector<16x128xf32> -> vector<16x128xf32>
    %75 = arith.subf %74, %51 : vector<16x128xf32>
    %c0_39 = arith.constant 0 : index
    %c1_40 = arith.constant 1 : index
    %76 = vector.load %arg6[%c0_39, %c1_40] : memref<16x4xi32, #tpu.memory_space<vmem>>, vector<16x1xi32>
    tpu.vector_store %arg6[%c0_39, %c1_40], %67 {strides = array<i32>} : memref<16x4xi32, #tpu.memory_space<vmem>>, vector<16x1xi32>,
    %cst_41 = arith.constant dense<0.000000e+00> : vector<256xf32>
    %77 = vector.multi_reduction <add>, %73, %cst_41 [0] : vector<16x256xf32> to vector<256xf32>
    %78 = vector.shape_cast %77 : vector<256xf32> to vector<1x256xf32>
    %c0_42 = arith.constant 0 : index
    %c1_43 = arith.constant 1 : index
    %c0_44 = arith.constant 0 : index
    %79 = vector.load %arg7[%c0_42, %c1_43, %c0_44] : memref<1x4x256xf32, #tpu.memory_space<vmem>>, vector<1x1x256xf32>
    %80 = vector.shape_cast %79 : vector<1x1x256xf32> to vector<1x256xf32>
    %81 = vector.shape_cast %78 : vector<1x256xf32> to vector<1x1x256xf32>
    tpu.vector_store %arg7[%c0_42, %c1_43, %c0_44], %81 {strides = array<i32>} : memref<1x4x256xf32, #tpu.memory_space<vmem>>, vector<1x1x256xf32>,
    %82 = arith.mulf %75, %75 : vector<16x128xf32>
    %83 = vector.shape_cast %82 : vector<16x128xf32> to vector<1x16x128xf32>
    %cst_45 = arith.constant dense<0.000000e+00> : vector<1xf32>
    %84 = vector.multi_reduction <add>, %83, %cst_45 [1, 2] : vector<1x16x128xf32> to vector<1xf32>
    %85 = vector.shape_cast %84 : vector<1xf32> to vector<1x1x1xf32>
    %86 = vector.extract %85[0, 0, 0] : f32 from vector<1x1x1xf32>
    %87 = vector.broadcast %86 : f32 to vector<1x1xf32>
    %c0_46 = arith.constant 0 : index
    %c1_47 = arith.constant 1 : index
    %c0_48 = arith.constant 0 : index
    %c0_49 = arith.constant 0 : index
    %88 = vector.load %arg8[%c0_46, %c1_47, %c0_48, %c0_49] : memref<1x4x1x1xf32, #tpu.memory_space<vmem>>, vector<1x1x1x1xf32>
    %89 = vector.shape_cast %88 : vector<1x1x1x1xf32> to vector<1x1xf32>
    %90 = vector.shape_cast %87 : vector<1x1xf32> to vector<1x1x1x1xf32>
    tpu.vector_store %arg8[%c0_46, %c1_47, %c0_48, %c0_49], %90 {strides = array<i32>} : memref<1x4x1x1xf32, #tpu.memory_space<vmem>>, vector<1x1x1x1xf32>,
    %91 = arith.addf %50, %74 : vector<16x128xf32>
    %92 = arith.subf %51, %74 : vector<16x128xf32>
    %c2 = arith.constant 2 : index
    %c0_50 = arith.constant 0 : index
    %c0_51 = arith.constant 0 : index
    %93 = vector.load %arg2[%c2, %c0_50, %c0_51] : memref<4x256x128xf32, #tpu.memory_space<vmem>>, vector<1x256x128xf32>
    %94 = vector.shape_cast %93 : vector<1x256x128xf32> to vector<256x128xf32>
    %c2_52 = arith.constant 2 : index
    %c0_53 = arith.constant 0 : index
    %c0_54 = arith.constant 0 : index
    %95 = vector.load %arg3[%c2_52, %c0_53, %c0_54] : memref<4x128x256xf32, #tpu.memory_space<vmem>>, vector<1x128x256xf32>
    %96 = vector.shape_cast %95 : vector<1x128x256xf32> to vector<128x256xf32>
    %c2_55 = arith.constant 2 : index
    %c0_56 = arith.constant 0 : index
    %97 = vector.load %arg4[%c2_55, %c0_56] : memref<4x256xf32, #tpu.memory_space<vmem>>, vector<1x256xf32>
    %cst_57 = arith.constant dense<0.000000e+00> : vector<16x256xf32>
    %98 = tpu.matmul %92, %96, %cst_57 {dimension_numbers = #tpu.dot_dimension_numbers<[1], [0], [0], [1], [0, 0, 1, 1], [], []>} : vector<16x128xf32>, vector<128x256xf32>, vector<16x256xf32> -> vector<16x256xf32>
    %99 = vector.broadcast %97 : vector<1x256xf32> to vector<16x256xf32>
    %100 = arith.subf %99, %98 : vector<16x256xf32>
    %cst_58 = arith.constant dense<0x7F800000> : vector<16xf32>
    %101 = vector.multi_reduction <minimumf>, %100, %cst_58 [1] : vector<16x256xf32> to vector<16xf32>
    %102 = vector.shape_cast %101 : vector<16xf32> to vector<16x1xf32>
    %103 = vector.broadcast %102 : vector<16x1xf32> to vector<16x256xf32>
    %104 = arith.cmpf ole, %100, %103 : vector<16x256xf32>
    %c256_i32_59 = arith.constant 256 : i32
    %105 = vector.broadcast %c256_i32_59 : i32 to vector<16x256xi32>
    %106 = arith.select %104, %9, %105 : vector<16x256xi1>, vector<16x256xi32>
    %cst_60 = arith.constant dense<2147483647> : vector<16xi32>
    %107 = vector.multi_reduction <minsi>, %106, %cst_60 [1] : vector<16x256xi32> to vector<16xi32>
    %108 = vector.shape_cast %107 : vector<16xi32> to vector<16x1xi32>
    %109 = vector.broadcast %108 : vector<16x1xi32> to vector<16x256xi32>
    %110 = arith.cmpi eq, %9, %109 : vector<16x256xi32>
    %cst_61 = arith.constant 0.000000e+00 : f32
    %111 = vector.shape_cast %8 : vector<16x1xf32> to vector<16x1xf32>
    %112 = vector.broadcast %111 : vector<16x1xf32> to vector<16x256xf32>
    %113 = vector.broadcast %cst_61 : f32 to vector<16x256xf32>
    %114 = arith.select %110, %112, %113 : vector<16x256xi1>, vector<16x256xf32>
    %cst_62 = arith.constant dense<0.000000e+00> : vector<16x128xf32>
    %115 = tpu.matmul %114, %94, %cst_62 {dimension_numbers = #tpu.dot_dimension_numbers<[1], [0], [0], [1], [0, 0, 1, 1], [], []>} : vector<16x256xf32>, vector<256x128xf32>, vector<16x128xf32> -> vector<16x128xf32>
    %116 = arith.subf %115, %92 : vector<16x128xf32>
    %c0_63 = arith.constant 0 : index
    %c2_64 = arith.constant 2 : index
    %117 = vector.load %arg6[%c0_63, %c2_64] : memref<16x4xi32, #tpu.memory_space<vmem>>, vector<16x1xi32>
    tpu.vector_store %arg6[%c0_63, %c2_64], %108 {strides = array<i32>} : memref<16x4xi32, #tpu.memory_space<vmem>>, vector<16x1xi32>,
    %cst_65 = arith.constant dense<0.000000e+00> : vector<256xf32>
    %118 = vector.multi_reduction <add>, %114, %cst_65 [0] : vector<16x256xf32> to vector<256xf32>
    %119 = vector.shape_cast %118 : vector<256xf32> to vector<1x256xf32>
    %c0_66 = arith.constant 0 : index
    %c2_67 = arith.constant 2 : index
    %c0_68 = arith.constant 0 : index
    %120 = vector.load %arg7[%c0_66, %c2_67, %c0_68] : memref<1x4x256xf32, #tpu.memory_space<vmem>>, vector<1x1x256xf32>
    %121 = vector.shape_cast %120 : vector<1x1x256xf32> to vector<1x256xf32>
    %122 = vector.shape_cast %119 : vector<1x256xf32> to vector<1x1x256xf32>
    tpu.vector_store %arg7[%c0_66, %c2_67, %c0_68], %122 {strides = array<i32>} : memref<1x4x256xf32, #tpu.memory_space<vmem>>, vector<1x1x256xf32>,
    %123 = arith.mulf %116, %116 : vector<16x128xf32>
    %124 = vector.shape_cast %123 : vector<16x128xf32> to vector<1x16x128xf32>
    %cst_69 = arith.constant dense<0.000000e+00> : vector<1xf32>
    %125 = vector.multi_reduction <add>, %124, %cst_69 [1, 2] : vector<1x16x128xf32> to vector<1xf32>
    %126 = vector.shape_cast %125 : vector<1xf32> to vector<1x1x1xf32>
    %127 = vector.extract %126[0, 0, 0] : f32 from vector<1x1x1xf32>
    %128 = vector.broadcast %127 : f32 to vector<1x1xf32>
    %c0_70 = arith.constant 0 : index
    %c2_71 = arith.constant 2 : index
    %c0_72 = arith.constant 0 : index
    %c0_73 = arith.constant 0 : index
    %129 = vector.load %arg8[%c0_70, %c2_71, %c0_72, %c0_73] : memref<1x4x1x1xf32, #tpu.memory_space<vmem>>, vector<1x1x1x1xf32>
    %130 = vector.shape_cast %129 : vector<1x1x1x1xf32> to vector<1x1xf32>
    %131 = vector.shape_cast %128 : vector<1x1xf32> to vector<1x1x1x1xf32>
    tpu.vector_store %arg8[%c0_70, %c2_71, %c0_72, %c0_73], %131 {strides = array<i32>} : memref<1x4x1x1xf32, #tpu.memory_space<vmem>>, vector<1x1x1x1xf32>,
    %132 = arith.addf %91, %115 : vector<16x128xf32>
    %133 = arith.subf %92, %115 : vector<16x128xf32>
    %c3 = arith.constant 3 : index
    %c0_74 = arith.constant 0 : index
    %c0_75 = arith.constant 0 : index
    %134 = vector.load %arg2[%c3, %c0_74, %c0_75] : memref<4x256x128xf32, #tpu.memory_space<vmem>>, vector<1x256x128xf32>
    %135 = vector.shape_cast %134 : vector<1x256x128xf32> to vector<256x128xf32>
    %c3_76 = arith.constant 3 : index
    %c0_77 = arith.constant 0 : index
    %c0_78 = arith.constant 0 : index
    %136 = vector.load %arg3[%c3_76, %c0_77, %c0_78] : memref<4x128x256xf32, #tpu.memory_space<vmem>>, vector<1x128x256xf32>
    %137 = vector.shape_cast %136 : vector<1x128x256xf32> to vector<128x256xf32>
    %c3_79 = arith.constant 3 : index
    %c0_80 = arith.constant 0 : index
    %138 = vector.load %arg4[%c3_79, %c0_80] : memref<4x256xf32, #tpu.memory_space<vmem>>, vector<1x256xf32>
    %cst_81 = arith.constant dense<0.000000e+00> : vector<16x256xf32>
    %139 = tpu.matmul %133, %137, %cst_81 {dimension_numbers = #tpu.dot_dimension_numbers<[1], [0], [0], [1], [0, 0, 1, 1], [], []>} : vector<16x128xf32>, vector<128x256xf32>, vector<16x256xf32> -> vector<16x256xf32>
    %140 = vector.broadcast %138 : vector<1x256xf32> to vector<16x256xf32>
    %141 = arith.subf %140, %139 : vector<16x256xf32>
    %cst_82 = arith.constant dense<0x7F800000> : vector<16xf32>
    %142 = vector.multi_reduction <minimumf>, %141, %cst_82 [1] : vector<16x256xf32> to vector<16xf32>
    %143 = vector.shape_cast %142 : vector<16xf32> to vector<16x1xf32>
    %144 = vector.broadcast %143 : vector<16x1xf32> to vector<16x256xf32>
    %145 = arith.cmpf ole, %141, %144 : vector<16x256xf32>
    %c256_i32_83 = arith.constant 256 : i32
    %146 = vector.broadcast %c256_i32_83 : i32 to vector<16x256xi32>
    %147 = arith.select %145, %9, %146 : vector<16x256xi1>, vector<16x256xi32>
    %cst_84 = arith.constant dense<2147483647> : vector<16xi32>
    %148 = vector.multi_reduction <minsi>, %147, %cst_84 [1] : vector<16x256xi32> to vector<16xi32>
    %149 = vector.shape_cast %148 : vector<16xi32> to vector<16x1xi32>
    %150 = vector.broadcast %149 : vector<16x1xi32> to vector<16x256xi32>
    %151 = arith.cmpi eq, %9, %150 : vector<16x256xi32>
    %cst_85 = arith.constant 0.000000e+00 : f32
    %152 = vector.shape_cast %8 : vector<16x1xf32> to vector<16x1xf32>
    %153 = vector.broadcast %152 : vector<16x1xf32> to vector<16x256xf32>
    %154 = vector.broadcast %cst_85 : f32 to vector<16x256xf32>
    %155 = arith.select %151, %153, %154 : vector<16x256xi1>, vector<16x256xf32>
    %cst_86 = arith.constant dense<0.000000e+00> : vector<16x128xf32>
    %156 = tpu.matmul %155, %135, %cst_86 {dimension_numbers = #tpu.dot_dimension_numbers<[1], [0], [0], [1], [0, 0, 1, 1], [], []>} : vector<16x256xf32>, vector<256x128xf32>, vector<16x128xf32> -> vector<16x128xf32>
    %157 = arith.subf %156, %133 : vector<16x128xf32>
    %c0_87 = arith.constant 0 : index
    %c3_88 = arith.constant 3 : index
    %158 = vector.load %arg6[%c0_87, %c3_88] : memref<16x4xi32, #tpu.memory_space<vmem>>, vector<16x1xi32>
    tpu.vector_store %arg6[%c0_87, %c3_88], %149 {strides = array<i32>} : memref<16x4xi32, #tpu.memory_space<vmem>>, vector<16x1xi32>,
    %cst_89 = arith.constant dense<0.000000e+00> : vector<256xf32>
    %159 = vector.multi_reduction <add>, %155, %cst_89 [0] : vector<16x256xf32> to vector<256xf32>
    %160 = vector.shape_cast %159 : vector<256xf32> to vector<1x256xf32>
    %c0_90 = arith.constant 0 : index
    %c3_91 = arith.constant 3 : index
    %c0_92 = arith.constant 0 : index
    %161 = vector.load %arg7[%c0_90, %c3_91, %c0_92] : memref<1x4x256xf32, #tpu.memory_space<vmem>>, vector<1x1x256xf32>
    %162 = vector.shape_cast %161 : vector<1x1x256xf32> to vector<1x256xf32>
    %163 = vector.shape_cast %160 : vector<1x256xf32> to vector<1x1x256xf32>
    tpu.vector_store %arg7[%c0_90, %c3_91, %c0_92], %163 {strides = array<i32>} : memref<1x4x256xf32, #tpu.memory_space<vmem>>, vector<1x1x256xf32>,
    %164 = arith.mulf %157, %157 : vector<16x128xf32>
    %165 = vector.shape_cast %164 : vector<16x128xf32> to vector<1x16x128xf32>
    %cst_93 = arith.constant dense<0.000000e+00> : vector<1xf32>
    %166 = vector.multi_reduction <add>, %165, %cst_93 [1, 2] : vector<1x16x128xf32> to vector<1xf32>
    %167 = vector.shape_cast %166 : vector<1xf32> to vector<1x1x1xf32>
    %168 = vector.extract %167[0, 0, 0] : f32 from vector<1x1x1xf32>
    %169 = vector.broadcast %168 : f32 to vector<1x1xf32>
    %c0_94 = arith.constant 0 : index
    %c3_95 = arith.constant 3 : index
    %c0_96 = arith.constant 0 : index
    %c0_97 = arith.constant 0 : index
    %170 = vector.load %arg8[%c0_94, %c3_95, %c0_96, %c0_97] : memref<1x4x1x1xf32, #tpu.memory_space<vmem>>, vector<1x1x1x1xf32>
    %171 = vector.shape_cast %170 : vector<1x1x1x1xf32> to vector<1x1xf32>
    %172 = vector.shape_cast %169 : vector<1x1xf32> to vector<1x1x1x1xf32>
    tpu.vector_store %arg8[%c0_94, %c3_95, %c0_96, %c0_97], %172 {strides = array<i32>} : memref<1x4x1x1xf32, #tpu.memory_space<vmem>>, vector<1x1x1x1xf32>,
    %173 = arith.addf %132, %156 : vector<16x128xf32>
    %c0_98 = arith.constant 0 : index
    %c0_99 = arith.constant 0 : index
    %174 = vector.load %arg5[%c0_98, %c0_99] : memref<16x128xf32, #tpu.memory_space<vmem>>, vector<16x128xf32>
    tpu.vector_store %arg5[%c0_98, %c0_99], %173 {strides = array<i32>} : memref<16x128xf32, #tpu.memory_space<vmem>>, vector<16x128xf32>,
    return
  }
  func.func @transform_0(%arg0: i32) -> (i32, i32) {
    %c0_i32 = arith.constant 0 : i32
    %c0_i32_0 = arith.constant 0 : i32
    return %arg0, %c0_i32 : i32, i32
  }
  func.func @transform_1(%arg0: i32) -> (i32, i32, i32) {
    %c0_i32 = arith.constant 0 : i32
    %c0_i32_0 = arith.constant 0 : i32
    %c0_i32_1 = arith.constant 0 : i32
    %c0_i32_2 = arith.constant 0 : i32
    return %c0_i32, %c0_i32_0, %c0_i32_1 : i32, i32, i32
  }
  func.func @transform_2(%arg0: i32) -> (i32, i32, i32) {
    %c0_i32 = arith.constant 0 : i32
    %c0_i32_0 = arith.constant 0 : i32
    %c0_i32_1 = arith.constant 0 : i32
    %c0_i32_2 = arith.constant 0 : i32
    return %c0_i32, %c0_i32_0, %c0_i32_1 : i32, i32, i32
  }
  func.func @transform_3(%arg0: i32) -> (i32, i32) {
    %c0_i32 = arith.constant 0 : i32
    %c0_i32_0 = arith.constant 0 : i32
    %c0_i32_1 = arith.constant 0 : i32
    return %c0_i32, %c0_i32_0 : i32, i32
  }
  func.func @transform_4(%arg0: i32) -> (i32, i32) {
    %c0_i32 = arith.constant 0 : i32
    %c0_i32_0 = arith.constant 0 : i32
    return %arg0, %c0_i32 : i32, i32
  }
  func.func @transform_5(%arg0: i32) -> (i32, i32) {
    %c0_i32 = arith.constant 0 : i32
    %c0_i32_0 = arith.constant 0 : i32
    return %arg0, %c0_i32 : i32, i32
  }
  func.func @transform_6(%arg0: i32) -> (i32, i32, i32) {
    %c0_i32 = arith.constant 0 : i32
    %c0_i32_0 = arith.constant 0 : i32
    %c0_i32_1 = arith.constant 0 : i32
    return %arg0, %c0_i32, %c0_i32_0 : i32, i32, i32
  }
  func.func @transform_7(%arg0: i32) -> (i32, i32, i32, i32) {
    %c0_i32 = arith.constant 0 : i32
    %c0_i32_0 = arith.constant 0 : i32
    %c0_i32_1 = arith.constant 0 : i32
    %c0_i32_2 = arith.constant 0 : i32
    return %arg0, %c0_i32, %c0_i32_0, %c0_i32_1 : i32, i32, i32, i32
  }
}

</mosaic_0001>

<llo_original>
// kernel: _rvq_forward.1
$region0: #{_rvq_forward.1}
  #allocation0 [shape = 'u32[]', space=smem, size = 0x4, offset = 0x4, fixed_abs, tag = 'smem constant byte address 0x4 - core index']
  #allocation1 [shape = 'u32[72,128]{1,0:T(1,128)}', space=vmem, size = 0x9000, scoped, tag = 'internal scratch']
  %s0 = inlined_call_operand.hbm [shape: f32[16,128], index: 0, kind: input, shape index: {}]
  %s1 = inlined_call_operand.hbm [shape: f32[4,256,128], index: 1, kind: input, shape index: {}]
  %s2 = inlined_call_operand.hbm [shape: f32[4,128,256], index: 2, kind: input, shape index: {}]
  %s3 = inlined_call_operand.hbm [shape: f32[4,256], index: 3, kind: input, shape index: {}]
  %s4 = inlined_call_operand.hbm [shape: f32[16,128], index: 4, kind: output, shape index: {0}]
  %s5 = inlined_call_operand.vmem [shape: s32[16,4], index: 5, kind: output, shape index: {1}]
  %s6 = inlined_call_operand.vmem [shape: f32[1,4,256], index: 6, kind: output, shape index: {2}]
  %s7 = inlined_call_operand.vmem [shape: f32[1,4,1,1], index: 7, kind: output, shape index: {3}]
  %8 = xla_tuple %s4, %s5, %s6, %s7
  %s9 = sld [smem:[#allocation0]]
  $region66: #{_rvq_forward.1} parent=0
    _
  %s11 = ssub.s32 1, %s9
  %s12 = scalar_select 0, %s11, %s9
  $region1: #{_rvq_forward.1} parent=0
    #allocation2 [shape = 'u8[8192]{0}', space=vmem, size = 0x2000, scoped, tag = 'input window, operand 0, single buffered']
    #allocation3 [shape = 's32[1]{0}', space=sflag, size = 0x4, scoped, tag = 'scoped memory for _rvq_forward.1']
    #allocation4 [shape = 's32[1]{0}', space=sflag, size = 0x4, scoped, tag = 'scoped memory for _rvq_forward.1']
    #allocation5 [shape = 'u8[524288]{0}', space=vmem, size = 0x80000, scoped, tag = 'input window, operand 1, single buffered']
    #allocation6 [shape = 's32[1]{0}', space=sflag, size = 0x4, scoped, tag = 'scoped memory for _rvq_forward.1']
    #allocation7 [shape = 'u8[524288]{0}', space=vmem, size = 0x80000, scoped, tag = 'input window, operand 2, single buffered']
    #allocation8 [shape = 'u8[4096]{0}', space=vmem, size = 0x1000, scoped, tag = 'input window, operand 3, single buffered']
    #allocation9 [shape = 's32[1]{0}', space=sflag, size = 0x4, scoped, tag = 'scoped memory for _rvq_forward.1']
    #allocation10 [shape = 'u8[8192]{0}', space=vmem, size = 0x2000, scoped, tag = 'output window, operand 0, single buffered']
    %13 = vsyncpa [#allocation3], 0
    %14 = vsyncpa [#allocation6], 0
    %15 = vsyncpa [#allocation9], 0
    %16 = vsyncpa [#allocation4], 0
    // Predicated region
    $region2: #{_rvq_forward.1} parent=1 // pred_check
      _
    $region3: #{_rvq_forward.1} parent=1 // pred_check_branch
      %18 = sbr.rel (0) target = $region5
    $region4: #{_rvq_forward.1} parent=1 // pred_region
      %20 = vsyncadd [#allocation3], 0
      %s21 = sshll.u32 %s0, 4
      %s22 = int_to_ptr.hbm [resolvable:$true] %s21
      %s23 = sshll.u32 [#allocation2], 4
      %s24 = int_to_ptr.vmem [resolvable:$true] %s23
      %29 = dma.hbm_to_vmem [thread:$0]  %s22, 256, %s24, [#allocation3], 128, 128, 8
    $region5: #{_rvq_forward.1} parent=1 // pred_fallthru
      _
    // Predicated region
    $region6: #{_rvq_forward.1} parent=1 // pred_check
      _
    $region7: #{_rvq_forward.1} parent=1 // pred_check_branch
      %31 = sbr.rel (0) target = $region9
    $region8: #{_rvq_forward.1} parent=1 // pred_region
      %33 = vsyncadd [#allocation6], 0
      %s34 = sshll.u32 %s1, 4
      %s35 = int_to_ptr.hbm [resolvable:$true] %s34
      %s36 = sshll.u32 [#allocation5], 4
      %s37 = int_to_ptr.vmem [resolvable:$true] %s36
      %42 = dma.hbm_to_vmem [thread:$0]  %s35, 16384, %s37, [#allocation6], 128, 128, 8
    $region9: #{_rvq_forward.1} parent=1 // pred_fallthru
      _
    // Predicated region
    $region10: #{_rvq_forward.1} parent=1 // pred_check
      _
    $region11: #{_rvq_forward.1} parent=1 // pred_check_branch
      %44 = sbr.rel (0) target = $region13
    $region12: #{_rvq_forward.1} parent=1 // pred_region
      %46 = vsyncadd [#allocation6], 0
      %s47 = sshll.u32 %s2, 4
      %s48 = int_to_ptr.hbm [resolvable:$true] %s47
      %s49 = sshll.u32 [#allocation7], 4
      %s50 = int_to_ptr.vmem [resolvable:$true] %s49
      %55 = dma.hbm_to_vmem [thread:$0]  %s48, 16384, %s50, [#allocation6], 256, 256, 16
    $region13: #{_rvq_forward.1} parent=1 // pred_fallthru
      _
    // Predicated region
    $region14: #{_rvq_forward.1} parent=1 // pred_check
      _
    $region15: #{_rvq_forward.1} parent=1 // pred_check_branch
      %57 = sbr.rel (0) target = $region17
    $region16: #{_rvq_forward.1} parent=1 // pred_region
      %59 = vsyncadd [#allocation9], 0
      %s61 = sshll.u32 %s3, 4
      %s62 = int_to_ptr.hbm [resolvable:$true] %s61
      %s63 = sshll.u32 [#allocation8], 4
      %s64 = int_to_ptr.vmem [resolvable:$true] %s63
      %66 = dma.hbm_to_vmem [thread:$0]  %s62, 128, %s64, [#allocation9]
    $region17: #{_rvq_forward.1} parent=1 // pred_fallthru
      _
    // Predicated region
    $region18: #{_rvq_forward.1} parent=1 // pred_check
      _
    $region19: #{_rvq_forward.1} parent=1 // pred_check_branch
      %68 = sbr.rel (0) target = $region21
    $region20: #{_rvq_forward.1} parent=1 // pred_region
      %70 = dma.done [#allocation3], 256
    $region21: #{_rvq_forward.1} parent=1 // pred_fallthru
      _
    // Predicated region
    $region22: #{_rvq_forward.1} parent=1 // pred_check
      _
    $region23: #{_rvq_forward.1} parent=1 // pred_check_branch
      %72 = sbr.rel (0) target = $region25
    $region24: #{_rvq_forward.1} parent=1 // pred_region
      %74 = dma.done [#allocation6], 16384
    $region25: #{_rvq_forward.1} parent=1 // pred_fallthru
      _
    // Predicated region
    $region26: #{_rvq_forward.1} parent=1 // pred_check
      _
    $region27: #{_rvq_forward.1} parent=1 // pred_check_branch
      %76 = sbr.rel (0) target = $region29
    $region28: #{_rvq_forward.1} parent=1 // pred_region
      %78 = dma.done [#allocation6], 16384
    $region29: #{_rvq_forward.1} parent=1 // pred_fallthru
      _
    // Predicated region
    $region30: #{_rvq_forward.1} parent=1 // pred_check
      _
    $region31: #{_rvq_forward.1} parent=1 // pred_check_branch
      %80 = sbr.rel (0) target = $region33
    $region32: #{_rvq_forward.1} parent=1 // pred_region
      %82 = dma.done [#allocation9], 128
    $region33: #{_rvq_forward.1} parent=1 // pred_fallthru
      _
    %v83 = vld [vmem:[#allocation2] sm:$0xff]
    %v84 = vld [vmem:[#allocation2 + $0x8] sm:$0xff]
    %v85 = vlaneseq
    %v86 = vshrl.u32 %v85, 7
    %v87 = vadd.s32 %v86, 8
    %s88 = smul.u32 0, 16
    %v89 = vstv %s88
    %v90 = vadd.s32 %v86, %v89
    %v91 = vadd.s32 %v87, %v89
    %vm92 = vcmp.lt.s32.totalorder %v90, 16
    %vm93 = vcmp.lt.s32.totalorder %v91, 16
    %v94 = vsel %vm92, 1, 0
    %v95 = vsel %vm93, 1, 0
    %v96 = vcvt.s32.f32 %v94
    %v97 = vcvt.s32.f32 %v95
    %v98 = vlaneseq
    %v99 = vand.u32 %v98, 127
    %v100 = vadd.s32 %v99, 128
    %v101 = vld [vmem:[#allocation5] sm:$0xff]
    %v102 = vld [vmem:[#allocation5 + $0x8] sm:$0xff]
    %v103 = vld [vmem:[#allocation5 + $0x10] sm:$0xff]
    %v104 = vld [vmem:[#allocation5 + $0x18] sm:$0xff]
    %v105 = vld [vmem:[#allocation5 + $0x20] sm:$0xff]
    %v106 = vld [vmem:[#allocation5 + $0x28] sm:$0xff]
    %v107 = vld [vmem:[#allocation5 + $0x30] sm:$0xff]
    %v108 = vld [vmem:[#allocation5 + $0x38] sm:$0xff]
    %v109 = vld [vmem:[#allocation5 + $0x40] sm:$0xff]
    %v110 = vld [vmem:[#allocation5 + $0x48] sm:$0xff]
    %v111 = vld [vmem:[#allocation5 + $0x50] sm:$0xff]
    %v112 = vld [vmem:[#allocation5 + $0x58] sm:$0xff]
    %v113 = vld [vmem:[#allocation5 + $0x60] sm:$0xff]
    %v114 = vld [vmem:[#allocation5 + $0x68] sm:$0xff]
    %v115 = vld [vmem:[#allocation5 + $0x70] sm:$0xff]
    %v116 = vld [vmem:[#allocation5 + $0x78] sm:$0xff]
    %v117 = vld [vmem:[#allocation5 + $0x80] sm:$0xff]
    %v118 = vld [vmem:[#allocation5 + $0x88] sm:$0xff]
    %v119 = vld [vmem:[#allocation5 + $0x90] sm:$0xff]
    %v120 = vld [vmem:[#allocation5 + $0x98] sm:$0xff]
    %v121 = vld [vmem:[#allocation5 + $0xa0] sm:$0xff]
    %v122 = vld [vmem:[#allocation5 + $0xa8] sm:$0xff]
    %v123 = vld [vmem:[#allocation5 + $0xb0] sm:$0xff]
    %v124 = vld [vmem:[#allocation5 + $0xb8] sm:$0xff]
    %v125 = vld [vmem:[#allocation5 + $0xc0] sm:$0xff]
    %v126 = vld [vmem:[#allocation5 + $0xc8] sm:$0xff]
    %v127 = vld [vmem:[#allocation5 + $0xd0] sm:$0xff]
    %v128 = vld [vmem:[#allocation5 + $0xd8] sm:$0xff]
    %v129 = vld [vmem:[#allocation5 + $0xe0] sm:$0xff]
    %v130 = vld [vmem:[#allocation5 + $0xe8] sm:$0xff]
    %v131 = vld [vmem:[#allocation5 + $0xf0] sm:$0xff]
    %v132 = vld [vmem:[#allocation5 + $0xf8] sm:$0xff]
    %v133 = vld [vmem:[#allocation7] sm:$0xff]
    %v134 = vld [vmem:[#allocation7 + $0x8] sm:$0xff]
    %v135 = vld [vmem:[#allocation7 + $0x10] sm:$0xff]
    %v136 = vld [vmem:[#allocation7 + $0x18] sm:$0xff]
    %v137 = vld [vmem:[#allocation7 + $0x20] sm:$0xff]
    %v138 = vld [vmem:[#allocation7 + $0x28] sm:$0xff]
    %v139 = vld [vmem:[#allocation7 + $0x30] sm:$0xff]
    %v140 = vld [vmem:[#allocation7 + $0x38] sm:$0xff]
    %v141 = vld [vmem:[#allocation7 + $0x40] sm:$0xff]
    %v142 = vld [vmem:[#allocation7 + $0x48] sm:$0xff]
    %v143 = vld [vmem:[#allocation7 + $0x50] sm:$0xff]
    %v144 = vld [vmem:[#allocation7 + $0x58] sm:$0xff]
    %v145 = vld [vmem:[#allocation7 + $0x60] sm:$0xff]
    %v146 = vld [vmem:[#allocation7 + $0x68] sm:$0xff]
    %v147 = vld [vmem:[#allocation7 + $0x70] sm:$0xff]
    %v148 = vld [vmem:[#allocation7 + $0x78] sm:$0xff]
    %v149 = vld [vmem:[#allocation7 + $0x80] sm:$0xff]
    %v150 = vld [vmem:[#allocation7 + $0x88] sm:$0xff]
    %v151 = vld [vmem:[#allocation7 + $0x90] sm:$0xff]
    %v152 = vld [vmem:[#allocation7 + $0x98] sm:$0xff]
    %v153 = vld [vmem:[#allocation7 + $0xa0] sm:$0xff]
    %v154 = vld [vmem:[#allocation7 + $0xa8] sm:$0xff]
    %v155 = vld [vmem:[#allocation7 + $0xb0] sm:$0xff]
    %v156 = vld [vmem:[#allocation7 + $0xb8] sm:$0xff]
    %v157 = vld [vmem:[#allocation7 + $0xc0] sm:$0xff]
    %v158 = vld [vmem:[#allocation7 + $0xc8] sm:$0xff]
    %v159 = vld [vmem:[#allocation7 + $0xd0] sm:$0xff]
    %v160 = vld [vmem:[#allocation7 + $0xd8] sm:$0xff]
    %v161 = vld [vmem:[#allocation7 + $0xe0] sm:$0xff]
    %v162 = vld [vmem:[#allocation7 + $0xe8] sm:$0xff]
    %v163 = vld [vmem:[#allocation7 + $0xf0] sm:$0xff]
    %v164 = vld [vmem:[#allocation7 + $0xf8] sm:$0xff]
    %v165 = vld [vmem:[#allocation8] ss:$4 sm:$0x3]
    %166 = vmatpush.msra.mxu0 %v163
    %167 = vmatpush.msra.mxu0 %v161
    %168 = vmatpush.msra.mxu0 %v159
    %169 = vmatpush.msra.mxu0 %v157
    %170 = vmatpush.msra.mxu0 %v155
    %171 = vmatpush.msra.mxu0 %v153
    %172 = vmatpush.msra.mxu0 %v151
    %173 = vmatpush.msra.mxu0 %v149
    %174 = vmatpush.msra.mxu0 %v147
    %175 = vmatpush.msra.mxu0 %v145
    %176 = vmatpush.msra.mxu0 %v143
    %177 = vmatpush.msra.mxu0 %v141
    %178 = vmatpush.msra.mxu0 %v139
    %179 = vmatpush.msra.mxu0 %v137
    %180 = vmatpush.msra.mxu0 %v135
    %181 = vmatpush.msra.mxu0 %v133
    %182 = vmatmul.f32.gmra.mxu0 %v83
    %v183 = vpop.f32.mrf.mxu0
    %v184 = vadd.f32 0.0, %v183
    %185 = vmatmul.f32.gmra.mxu0 %v84
    %v186 = vpop.f32.mrf.mxu0
    %v187 = vadd.f32 0.0, %v186
    %188 = vdwg.mxu0
    %189 = vmatpush.msra.mxu0 %v164
    %190 = vmatpush.msra.mxu0 %v162
    %191 = vmatpush.msra.mxu0 %v160
    %192 = vmatpush.msra.mxu0 %v158
    %193 = vmatpush.msra.mxu0 %v156
    %194 = vmatpush.msra.mxu0 %v154
    %195 = vmatpush.msra.mxu0 %v152
    %196 = vmatpush.msra.mxu0 %v150
    %197 = vmatpush.msra.mxu0 %v148
    %198 = vmatpush.msra.mxu0 %v146
    %199 = vmatpush.msra.mxu0 %v144
    %200 = vmatpush.msra.mxu0 %v142
    %201 = vmatpush.msra.mxu0 %v140
    %202 = vmatpush.msra.mxu0 %v138
    %203 = vmatpush.msra.mxu0 %v136
    %204 = vmatpush.msra.mxu0 %v134
    %205 = vmatmul.f32.gmra.mxu0 %v83
    %v206 = vpop.f32.mrf.mxu0
    %v207 = vadd.f32 0.0, %v206
    %208 = vmatmul.f32.gmra.mxu0 %v84
    %v209 = vpop.f32.mrf.mxu0
    %v210 = vadd.f32 0.0, %v209
    %211 = vdwg.mxu0
    %v213 = vperm.slane %v165, 0
    %v214 = vperm.slane %v165, 1
    %v217 = vsub.f32 %v213, %v184
    %v218 = vsub.f32 %v214, %v207
    %v219 = vsub.f32 %v213, %v187
    %v220 = vsub.f32 %v214, %v210
    %v221 = vmin.f32 %v217, %v218
    %222 = vmin.xlane.f32.xlu0 %v221
    %v223 = vpop.xlane.xlu0 %222
    %v224 = vmin.f32 %v219, %v220
    %225 = vmin.xlane.f32.xlu0 %v224
    %v226 = vpop.xlane.xlu0 %225
    %vm227 = vcmp.le.f32.partialorder %v217, %v223
    %vm228 = vcmp.le.f32.partialorder %v218, %v223
    %vm229 = vcmp.le.f32.partialorder %v219, %v226
    %vm230 = vcmp.le.f32.partialorder %v220, %v226
    %v231 = vsel %vm227, %v99, 256
    %v232 = vsel %vm228, %v100, 256
    %v233 = vsel %vm229, %v99, 256
    %v234 = vsel %vm230, %v100, 256
    %vm235 = vcmp.lt.s32.totalorder %v231, %v232
    %v236 = vsel %vm235, %v231, %v232
    %v237 = vand.u32 %v236, 65535
    %v238 = vshra.s32 %v236, 16
    %v239 = vcvt.s32.f32 %v237
    %v240 = vcvt.s32.f32 %v238
    %241 = vmin.xlane.f32.xlu0 %v240
    %v242 = vpop.xlane.xlu0 %241
    %vm243 = vcmp.eq.f32.partialorder %v240, %v242
    %v244 = vsel %vm243, %v239, inf
    %245 = vmin.xlane.f32.xlu0 %v244
    %v246 = vpop.xlane.xlu0 %245
    %v247 = vcvt.f32.s32 %v246
    %v248 = vcvt.f32.s32 %v242
    %v249 = vshll.u32 %v248, 16
    %v250 = vadd.s32 %v249, %v247
    %vm251 = vcmp.lt.s32.totalorder %v233, %v234
    %v252 = vsel %vm251, %v233, %v234
    %v253 = vand.u32 %v252, 65535
    %v254 = vshra.s32 %v252, 16
    %v255 = vcvt.s32.f32 %v253
    %v256 = vcvt.s32.f32 %v254
    %257 = vmin.xlane.f32.xlu0 %v256
    %v258 = vpop.xlane.xlu0 %257
    %vm259 = vcmp.eq.f32.partialorder %v256, %v258
    %v260 = vsel %vm259, %v255, inf
    %261 = vmin.xlane.f32.xlu0 %v260
    %v262 = vpop.xlane.xlu0 %261
    %v263 = vcvt.f32.s32 %v262
    %v264 = vcvt.f32.s32 %v258
    %v265 = vshll.u32 %v264, 16
    %v266 = vadd.s32 %v265, %v263
    %vm267 = vcmp.eq.s32.totalorder %v99, %v250
    %vm268 = vcmp.eq.s32.totalorder %v100, %v250
    %vm269 = vcmp.eq.s32.totalorder %v99, %v266
    %vm270 = vcmp.eq.s32.totalorder %v100, %v266
    %v271 = vsel %vm267, %v96, 0.0
    %v272 = vsel %vm268, %v96, 0.0
    %v273 = vsel %vm269, %v97, 0.0
    %v274 = vsel %vm270, %v97, 0.0
    %275 = vmatpush.msra.mxu0 %v116
    %276 = vmatpush.msra.mxu0 %v115
    %277 = vmatpush.msra.mxu0 %v114
    %278 = vmatpush.msra.mxu0 %v113
    %279 = vmatpush.msra.mxu0 %v112
    %280 = vmatpush.msra.mxu0 %v111
    %281 = vmatpush.msra.mxu0 %v110
    %282 = vmatpush.msra.mxu0 %v109
    %283 = vmatpush.msra.mxu0 %v108
    %284 = vmatpush.msra.mxu0 %v107
    %285 = vmatpush.msra.mxu0 %v106
    %286 = vmatpush.msra.mxu0 %v105
    %287 = vmatpush.msra.mxu0 %v104
    %288 = vmatpush.msra.mxu0 %v103
    %289 = vmatpush.msra.mxu0 %v102
    %290 = vmatpush.msra.mxu0 %v101
    %291 = vmatmul.f32.gmra.mxu0 %v271
    %v292 = vpop.f32.mrf.mxu0
    %v293 = vadd.f32 0.0, %v292
    %294 = vmatmul.f32.gmra.mxu0 %v273
    %v295 = vpop.f32.mrf.mxu0
    %v296 = vadd.f32 0.0, %v295
    %297 = vdwg.mxu0
    %298 = vmatpush.msra.mxu0 %v132
    %299 = vmatpush.msra.mxu0 %v131
    %300 = vmatpush.msra.mxu0 %v130
    %301 = vmatpush.msra.mxu0 %v129
    %302 = vmatpush.msra.mxu0 %v128
    %303 = vmatpush.msra.mxu0 %v127
    %304 = vmatpush.msra.mxu0 %v126
    %305 = vmatpush.msra.mxu0 %v125
    %306 = vmatpush.msra.mxu0 %v124
    %307 = vmatpush.msra.mxu0 %v123
    %308 = vmatpush.msra.mxu0 %v122
    %309 = vmatpush.msra.mxu0 %v121
    %310 = vmatpush.msra.mxu0 %v120
    %311 = vmatpush.msra.mxu0 %v119
    %312 = vmatpush.msra.mxu0 %v118
    %313 = vmatpush.msra.mxu0 %v117
    %314 = vmatmul.f32.gmra.mxu0 %v272
    %v315 = vpop.f32.mrf.mxu0
    %v316 = vadd.f32 %v293, %v315
    %317 = vmatmul.f32.gmra.mxu0 %v274
    %v318 = vpop.f32.mrf.mxu0
    %v319 = vadd.f32 %v296, %v318
    %320 = vdwg.mxu0
    %v321 = vsub.f32 %v316, %v83
    %v322 = vsub.f32 %v319, %v84
    %vm323 = vcmask 7168
    %324 = vst.msk [vmem:[%s5] sm:$0xff] %vm323, %v250
    %325 = vst.msk [vmem:[%s5 + $0x8] sm:$0xff] %vm323, %v266
    %v326 = vadd.f32 %v271, %v273
    %v327 = vrot.slane %v326, 4
    %v328 = vadd.f32 %v326, %v327
    %v329 = vrot.slane %v328, 2
    %v330 = vadd.f32 %v328, %v329
    %v331 = vrot.slane %v330, 1
    %v332 = vadd.f32 %v330, %v331
    %v333 = vadd.f32 %v272, %v274
    %v334 = vrot.slane %v333, 4
    %v335 = vadd.f32 %v333, %v334
    %v336 = vrot.slane %v335, 2
    %v337 = vadd.f32 %v335, %v336
    %v338 = vrot.slane %v337, 1
    %v339 = vadd.f32 %v337, %v338
    %v342 = vrot.slane %v339, 7
    %vm343 = vcmask 1040384
    %v344 = vsel %vm343, %v332, %v342
    %v346 = vlaneseq
    %vm347 = vcmp.ge.s32.totalorder %v346, 0
    %vm348 = vcmp.lt.s32.totalorder %v346, 256
    %vm349 = vmand %vm347, %vm348
    %350 = vst.msk [vmem:[%s6] ss:$4 sm:$0x3] %vm349, %v344
    %v351 = vmul.f32 %v321, %v321
    %v352 = vmul.f32 %v322, %v322
    %v353 = vadd.f32 %v351, %v352
    %354 = vadd.xlane.f32.xlu0 %v353
    %v355 = vpop.xlane.xlu0 %354
    %v356 = vrot.slane %v355, 4
    %v357 = vadd.f32 %v355, %v356
    %v358 = vrot.slane %v357, 2
    %v359 = vadd.f32 %v357, %v358
    %v360 = vrot.slane %v359, 1
    %v361 = vadd.f32 %v359, %v360
    %s362 = vtos %v361
    %v363 = vstv %s362
    %vm364 = vcmask 0
    %365 = vst.msk [vmem:[%s7] sm:$0x1] %vm364, %v363
    %v366 = vadd.f32 %v316, 0.0
    %v367 = vadd.f32 %v319, 0.0
    %v368 = vsub.f32 %v83, %v316
    %v369 = vsub.f32 %v84, %v319
    %s370 = scalar_lea.vmem [#allocation5], 256
    %v371 = vld [vmem:[%s370] sm:$0xff]
    %v372 = vld [vmem:[%s370 + $0x8] sm:$0xff]
    %v373 = vld [vmem:[%s370 + $0x10] sm:$0xff]
    %v374 = vld [vmem:[%s370 + $0x18] sm:$0xff]
    %v375 = vld [vmem:[%s370 + $0x20] sm:$0xff]
    %v376 = vld [vmem:[%s370 + $0x28] sm:$0xff]
    %v377 = vld [vmem:[%s370 + $0x30] sm:$0xff]
    %v378 = vld [vmem:[%s370 + $0x38] sm:$0xff]
    %v379 = vld [vmem:[%s370 + $0x40] sm:$0xff]
    %v380 = vld [vmem:[%s370 + $0x48] sm:$0xff]
    %v381 = vld [vmem:[%s370 + $0x50] sm:$0xff]
    %v382 = vld [vmem:[%s370 + $0x58] sm:$0xff]
    %v383 = vld [vmem:[%s370 + $0x60] sm:$0xff]
    %v384 = vld [vmem:[%s370 + $0x68] sm:$0xff]
    %v385 = vld [vmem:[%s370 + $0x70] sm:$0xff]
    %v386 = vld [vmem:[%s370 + $0x78] sm:$0xff]
    %v387 = vld [vmem:[%s370 + $0x80] sm:$0xff]
    %v388 = vld [vmem:[%s370 + $0x88] sm:$0xff]
    %v389 = vld [vmem:[%s370 + $0x90] sm:$0xff]
    %v390 = vld [vmem:[%s370 + $0x98] sm:$0xff]
    %v391 = vld [vmem:[%s370 + $0xa0] sm:$0xff]
    %v392 = vld [vmem:[%s370 + $0xa8] sm:$0xff]
    %v393 = vld [vmem:[%s370 + $0xb0] sm:$0xff]
    %v394 = vld [vmem:[%s370 + $0xb8] sm:$0xff]
    %v395 = vld [vmem:[%s370 + $0xc0] sm:$0xff]
    %v396 = vld [vmem:[%s370 + $0xc8] sm:$0xff]
    %v397 = vld [vmem:[%s370 + $0xd0] sm:$0xff]
    %v398 = vld [vmem:[%s370 + $0xd8] sm:$0xff]
    %v399 = vld [vmem:[%s370 + $0xe0] sm:$0xff]
    %v400 = vld [vmem:[%s370 + $0xe8] sm:$0xff]
    %v401 = vld [vmem:[%s370 + $0xf0] sm:$0xff]
    %v402 = vld [vmem:[%s370 + $0xf8] sm:$0xff]
    %s403 = scalar_lea.vmem [#allocation7], 256
    %v404 = vld [vmem:[%s403] sm:$0xff]
    %v405 = vld [vmem:[%s403 + $0x8] sm:$0xff]
    %v406 = vld [vmem:[%s403 + $0x10] sm:$0xff]
    %v407 = vld [vmem:[%s403 + $0x18] sm:$0xff]
    %v408 = vld [vmem:[%s403 + $0x20] sm:$0xff]
    %v409 = vld [vmem:[%s403 + $0x28] sm:$0xff]
    %v410 = vld [vmem:[%s403 + $0x30] sm:$0xff]
    %v411 = vld [vmem:[%s403 + $0x38] sm:$0xff]
    %v412 = vld [vmem:[%s403 + $0x40] sm:$0xff]
    %v413 = vld [vmem:[%s403 + $0x48] sm:$0xff]
    %v414 = vld [vmem:[%s403 + $0x50] sm:$0xff]
    %v415 = vld [vmem:[%s403 + $0x58] sm:$0xff]
    %v416 = vld [vmem:[%s403 + $0x60] sm:$0xff]
    %v417 = vld [vmem:[%s403 + $0x68] sm:$0xff]
    %v418 = vld [vmem:[%s403 + $0x70] sm:$0xff]
    %v419 = vld [vmem:[%s403 + $0x78] sm:$0xff]
    %v420 = vld [vmem:[%s403 + $0x80] sm:$0xff]
    %v421 = vld [vmem:[%s403 + $0x88] sm:$0xff]
    %v422 = vld [vmem:[%s403 + $0x90] sm:$0xff]
    %v423 = vld [vmem:[%s403 + $0x98] sm:$0xff]
    %v424 = vld [vmem:[%s403 + $0xa0] sm:$0xff]
    %v425 = vld [vmem:[%s403 + $0xa8] sm:$0xff]
    %v426 = vld [vmem:[%s403 + $0xb0] sm:$0xff]
    %v427 = vld [vmem:[%s403 + $0xb8] sm:$0xff]
    %v428 = vld [vmem:[%s403 + $0xc0] sm:$0xff]
    %v429 = vld [vmem:[%s403 + $0xc8] sm:$0xff]
    %v430 = vld [vmem:[%s403 + $0xd0] sm:$0xff]
    %v431 = vld [vmem:[%s403 + $0xd8] sm:$0xff]
    %v432 = vld [vmem:[%s403 + $0xe0] sm:$0xff]
    %v433 = vld [vmem:[%s403 + $0xe8] sm:$0xff]
    %v434 = vld [vmem:[%s403 + $0xf0] sm:$0xff]
    %v435 = vld [vmem:[%s403 + $0xf8] sm:$0xff]
    %s436 = scalar_lea.vmem [#allocation8], 1
    %v437 = vld [vmem:[%s436] ss:$4 sm:$0x3]
    %438 = vmatpush.msra.mxu0 %v434
    %439 = vmatpush.msra.mxu0 %v432
    %440 = vmatpush.msra.mxu0 %v430
    %441 = vmatpush.msra.mxu0 %v428
    %442 = vmatpush.msra.mxu0 %v426
    %443 = vmatpush.msra.mxu0 %v424
    %444 = vmatpush.msra.mxu0 %v422
    %445 = vmatpush.msra.mxu0 %v420
    %446 = vmatpush.msra.mxu0 %v418
    %447 = vmatpush.msra.mxu0 %v416
    %448 = vmatpush.msra.mxu0 %v414
    %449 = vmatpush.msra.mxu0 %v412
    %450 = vmatpush.msra.mxu0 %v410
    %451 = vmatpush.msra.mxu0 %v408
    %452 = vmatpush.msra.mxu0 %v406
    %453 = vmatpush.msra.mxu0 %v404
    %454 = vmatmul.f32.gmra.mxu0 %v368
    %v455 = vpop.f32.mrf.mxu0
    %v456 = vadd.f32 0.0, %v455
    %457 = vmatmul.f32.gmra.mxu0 %v369
    %v458 = vpop.f32.mrf.mxu0
    %v459 = vadd.f32 0.0, %v458
    %460 = vdwg.mxu0
    %461 = vmatpush.msra.mxu0 %v435
    %462 = vmatpush.msra.mxu0 %v433
    %463 = vmatpush.msra.mxu0 %v431
    %464 = vmatpush.msra.mxu0 %v429
    %465 = vmatpush.msra.mxu0 %v427
    %466 = vmatpush.msra.mxu0 %v425
    %467 = vmatpush.msra.mxu0 %v423
    %468 = vmatpush.msra.mxu0 %v421
    %469 = vmatpush.msra.mxu0 %v419
    %470 = vmatpush.msra.mxu0 %v417
    %471 = vmatpush.msra.mxu0 %v415
    %472 = vmatpush.msra.mxu0 %v413
    %473 = vmatpush.msra.mxu0 %v411
    %474 = vmatpush.msra.mxu0 %v409
    %475 = vmatpush.msra.mxu0 %v407
    %476 = vmatpush.msra.mxu0 %v405
    %477 = vmatmul.f32.gmra.mxu0 %v368
    %v478 = vpop.f32.mrf.mxu0
    %v479 = vadd.f32 0.0, %v478
    %480 = vmatmul.f32.gmra.mxu0 %v369
    %v481 = vpop.f32.mrf.mxu0
    %v482 = vadd.f32 0.0, %v481
    %483 = vdwg.mxu0
    %v485 = vperm.slane %v437, 0
    %v486 = vperm.slane %v437, 1
    %v489 = vsub.f32 %v485, %v456
    %v490 = vsub.f32 %v486, %v479
    %v491 = vsub.f32 %v485, %v459
    %v492 = vsub.f32 %v486, %v482
    %v493 = vmin.f32 %v489, %v490
    %494 = vmin.xlane.f32.xlu0 %v493
    %v495 = vpop.xlane.xlu0 %494
    %v496 = vmin.f32 %v491, %v492
    %497 = vmin.xlane.f32.xlu0 %v496
    %v498 = vpop.xlane.xlu0 %497
    %vm499 = vcmp.le.f32.partialorder %v489, %v495
    %vm500 = vcmp.le.f32.partialorder %v490, %v495
    %vm501 = vcmp.le.f32.partialorder %v491, %v498
    %vm502 = vcmp.le.f32.partialorder %v492, %v498
    %v503 = vsel %vm499, %v99, 256
    %v504 = vsel %vm500, %v100, 256
    %v505 = vsel %vm501, %v99, 256
    %v506 = vsel %vm502, %v100, 256
    %vm507 = vcmp.lt.s32.totalorder %v503, %v504
    %v508 = vsel %vm507, %v503, %v504
    %v509 = vand.u32 %v508, 65535
    %v510 = vshra.s32 %v508, 16
    %v511 = vcvt.s32.f32 %v509
    %v512 = vcvt.s32.f32 %v510
    %513 = vmin.xlane.f32.xlu0 %v512
    %v514 = vpop.xlane.xlu0 %513
    %vm515 = vcmp.eq.f32.partialorder %v512, %v514
    %v516 = vsel %vm515, %v511, inf
    %517 = vmin.xlane.f32.xlu0 %v516
    %v518 = vpop.xlane.xlu0 %517
    %v519 = vcvt.f32.s32 %v518
    %v520 = vcvt.f32.s32 %v514
    %v521 = vshll.u32 %v520, 16
    %v522 = vadd.s32 %v521, %v519
    %vm523 = vcmp.lt.s32.totalorder %v505, %v506
    %v524 = vsel %vm523, %v505, %v506
    %v525 = vand.u32 %v524, 65535
    %v526 = vshra.s32 %v524, 16
    %v527 = vcvt.s32.f32 %v525
    %v528 = vcvt.s32.f32 %v526
    %529 = vmin.xlane.f32.xlu0 %v528
    %v530 = vpop.xlane.xlu0 %529
    %vm531 = vcmp.eq.f32.partialorder %v528, %v530
    %v532 = vsel %vm531, %v527, inf
    %533 = vmin.xlane.f32.xlu0 %v532
    %v534 = vpop.xlane.xlu0 %533
    %v535 = vcvt.f32.s32 %v534
    %v536 = vcvt.f32.s32 %v530
    %v537 = vshll.u32 %v536, 16
    %v538 = vadd.s32 %v537, %v535
    %vm539 = vcmp.eq.s32.totalorder %v99, %v522
    %vm540 = vcmp.eq.s32.totalorder %v100, %v522
    %vm541 = vcmp.eq.s32.totalorder %v99, %v538
    %vm542 = vcmp.eq.s32.totalorder %v100, %v538
    %v543 = vsel %vm539, %v96, 0.0
    %v544 = vsel %vm540, %v96, 0.0
    %v545 = vsel %vm541, %v97, 0.0
    %v546 = vsel %vm542, %v97, 0.0
    %547 = vmatpush.msra.mxu0 %v386
    %548 = vmatpush.msra.mxu0 %v385
    %549 = vmatpush.msra.mxu0 %v384
    %550 = vmatpush.msra.mxu0 %v383
    %551 = vmatpush.msra.mxu0 %v382
    %552 = vmatpush.msra.mxu0 %v381
    %553 = vmatpush.msra.mxu0 %v380
    %554 = vmatpush.msra.mxu0 %v379
    %555 = vmatpush.msra.mxu0 %v378
    %556 = vmatpush.msra.mxu0 %v377
    %557 = vmatpush.msra.mxu0 %v376
    %558 = vmatpush.msra.mxu0 %v375
    %559 = vmatpush.msra.mxu0 %v374
    %560 = vmatpush.msra.mxu0 %v373
    %561 = vmatpush.msra.mxu0 %v372
    %562 = vmatpush.msra.mxu0 %v371
    %563 = vmatmul.f32.gmra.mxu0 %v543
    %v564 = vpop.f32.mrf.mxu0
    %v565 = vadd.f32 0.0, %v564
    %566 = vmatmul.f32.gmra.mxu0 %v545
    %v567 = vpop.f32.mrf.mxu0
    %v568 = vadd.f32 0.0, %v567
    %569 = vdwg.mxu0
    %570 = vmatpush.msra.mxu0 %v402
    %571 = vmatpush.msra.mxu0 %v401
    %572 = vmatpush.msra.mxu0 %v400
    %573 = vmatpush.msra.mxu0 %v399
    %574 = vmatpush.msra.mxu0 %v398
    %575 = vmatpush.msra.mxu0 %v397
    %576 = vmatpush.msra.mxu0 %v396
    %577 = vmatpush.msra.mxu0 %v395
    %578 = vmatpush.msra.mxu0 %v394
    %579 = vmatpush.msra.mxu0 %v393
    %580 = vmatpush.msra.mxu0 %v392
    %581 = vmatpush.msra.mxu0 %v391
    %582 = vmatpush.msra.mxu0 %v390
    %583 = vmatpush.msra.mxu0 %v389
    %584 = vmatpush.msra.mxu0 %v388
    %585 = vmatpush.msra.mxu0 %v387
    %586 = vmatmul.f32.gmra.mxu0 %v544
    %v587 = vpop.f32.mrf.mxu0
    %v588 = vadd.f32 %v565, %v587
    %589 = vmatmul.f32.gmra.mxu0 %v546
    %v590 = vpop.f32.mrf.mxu0
    %v591 = vadd.f32 %v568, %v590
    %592 = vdwg.mxu0
    %v593 = vsub.f32 %v588, %v368
    %v594 = vsub.f32 %v591, %v369
    %vm595 = vcmask 15368
    %596 = vst.msk [vmem:[%s5] sm:$0xff] %vm595, %v522
    %597 = vst.msk [vmem:[%s5 + $0x8] sm:$0xff] %vm595, %v538
    %v598 = vadd.f32 %v543, %v545
    %v599 = vrot.slane %v598, 4
    %v600 = vadd.f32 %v598, %v599
    %v601 = vrot.slane %v600, 2
    %v602 = vadd.f32 %v600, %v601
    %v603 = vrot.slane %v602, 1
    %v604 = vadd.f32 %v602, %v603
    %v605 = vadd.f32 %v544, %v546
    %v606 = vrot.slane %v605, 4
    %v607 = vadd.f32 %v605, %v606
    %v608 = vrot.slane %v607, 2
    %v609 = vadd.f32 %v607, %v608
    %v610 = vrot.slane %v609, 1
    %v611 = vadd.f32 %v609, %v610
    %v614 = vrot.slane %v611, 7
    %v615 = vsel %vm343, %v604, %v614
    %s617 = scalar_lea.vmem %s6, 1
    %618 = vst.msk [vmem:[%s617] ss:$4 sm:$0x3] %vm349, %v615
    %v619 = vmul.f32 %v593, %v593
    %v620 = vmul.f32 %v594, %v594
    %v621 = vadd.f32 %v619, %v620
    %622 = vadd.xlane.f32.xlu0 %v621
    %v623 = vpop.xlane.xlu0 %622
    %v624 = vrot.slane %v623, 4
    %v625 = vadd.f32 %v623, %v624
    %v626 = vrot.slane %v625, 2
    %v627 = vadd.f32 %v625, %v626
    %v628 = vrot.slane %v627, 1
    %v629 = vadd.f32 %v627, %v628
    %s630 = vtos %v629
    %v631 = vstv %s630
    %s632 = scalar_lea.vmem %s7, 1
    %633 = vst.msk [vmem:[%s632] sm:$0x1] %vm364, %v631
    %v634 = vadd.f32 %v366, %v588
    %v635 = vadd.f32 %v367, %v591
    %v636 = vsub.f32 %v368, %v588
    %v637 = vsub.f32 %v369, %v591
    %s638 = scalar_lea.vmem [#allocation5], 512
    %v639 = vld [vmem:[%s638] sm:$0xff]
    %v640 = vld [vmem:[%s638 + $0x8] sm:$0xff]
    %v641 = vld [vmem:[%s638 + $0x10] sm:$0xff]
    %v642 = vld [vmem:[%s638 + $0x18] sm:$0xff]
    %v643 = vld [vmem:[%s638 + $0x20] sm:$0xff]
    %v644 = vld [vmem:[%s638 + $0x28] sm:$0xff]
    %v645 = vld [vmem:[%s638 + $0x30] sm:$0xff]
    %v646 = vld [vmem:[%s638 + $0x38] sm:$0xff]
    %v647 = vld [vmem:[%s638 + $0x40] sm:$0xff]
    %v648 = vld [vmem:[%s638 + $0x48] sm:$0xff]
    %v649 = vld [vmem:[%s638 + $0x50] sm:$0xff]
    %v650 = vld [vmem:[%s638 + $0x58] sm:$0xff]
    %v651 = vld [vmem:[%s638 + $0x60] sm:$0xff]
    %v652 = vld [vmem:[%s638 + $0x68] sm:$0xff]
    %v653 = vld [vmem:[%s638 + $0x70] sm:$0xff]
    %v654 = vld [vmem:[%s638 + $0x78] sm:$0xff]
    %v655 = vld [vmem:[%s638 + $0x80] sm:$0xff]
    %v656 = vld [vmem:[%s638 + $0x88] sm:$0xff]
    %v657 = vld [vmem:[%s638 + $0x90] sm:$0xff]
    %v658 = vld [vmem:[%s638 + $0x98] sm:$0xff]
    %v659 = vld [vmem:[%s638 + $0xa0] sm:$0xff]
    %v660 = vld [vmem:[%s638 + $0xa8] sm:$0xff]
    %v661 = vld [vmem:[%s638 + $0xb0] sm:$0xff]
    %v662 = vld [vmem:[%s638 + $0xb8] sm:$0xff]
    %v663 = vld [vmem:[%s638 + $0xc0] sm:$0xff]
    %v664 = vld [vmem:[%s638 + $0xc8] sm:$0xff]
    %v665 = vld [vmem:[%s638 + $0xd0] sm:$0xff]
    %v666 = vld [vmem:[%s638 + $0xd8] sm:$0xff]
    %v667 = vld [vmem:[%s638 + $0xe0] sm:$0xff]
    %v668 = vld [vmem:[%s638 + $0xe8] sm:$0xff]
    %v669 = vld [vmem:[%s638 + $0xf0] sm:$0xff]
    %v670 = vld [vmem:[%s638 + $0xf8] sm:$0xff]
    %s671 = scalar_lea.vmem [#allocation7], 512
    %v672 = vld [vmem:[%s671] sm:$0xff]
    %v673 = vld [vmem:[%s671 + $0x8] sm:$0xff]
    %v674 = vld [vmem:[%s671 + $0x10] sm:$0xff]
    %v675 = vld [vmem:[%s671 + $0x18] sm:$0xff]
    %v676 = vld [vmem:[%s671 + $0x20] sm:$0xff]
    %v677 = vld [vmem:[%s671 + $0x28] sm:$0xff]
    %v678 = vld [vmem:[%s671 + $0x30] sm:$0xff]
    %v679 = vld [vmem:[%s671 + $0x38] sm:$0xff]
    %v680 = vld [vmem:[%s671 + $0x40] sm:$0xff]
    %v681 = vld [vmem:[%s671 + $0x48] sm:$0xff]
    %v682 = vld [vmem:[%s671 + $0x50] sm:$0xff]
    %v683 = vld [vmem:[%s671 + $0x58] sm:$0xff]
    %v684 = vld [vmem:[%s671 + $0x60] sm:$0xff]
    %v685 = vld [vmem:[%s671 + $0x68] sm:$0xff]
    %v686 = vld [vmem:[%s671 + $0x70] sm:$0xff]
    %v687 = vld [vmem:[%s671 + $0x78] sm:$0xff]
    %v688 = vld [vmem:[%s671 + $0x80] sm:$0xff]
    %v689 = vld [vmem:[%s671 + $0x88] sm:$0xff]
    %v690 = vld [vmem:[%s671 + $0x90] sm:$0xff]
    %v691 = vld [vmem:[%s671 + $0x98] sm:$0xff]
    %v692 = vld [vmem:[%s671 + $0xa0] sm:$0xff]
    %v693 = vld [vmem:[%s671 + $0xa8] sm:$0xff]
    %v694 = vld [vmem:[%s671 + $0xb0] sm:$0xff]
    %v695 = vld [vmem:[%s671 + $0xb8] sm:$0xff]
    %v696 = vld [vmem:[%s671 + $0xc0] sm:$0xff]
    %v697 = vld [vmem:[%s671 + $0xc8] sm:$0xff]
    %v698 = vld [vmem:[%s671 + $0xd0] sm:$0xff]
    %v699 = vld [vmem:[%s671 + $0xd8] sm:$0xff]
    %v700 = vld [vmem:[%s671 + $0xe0] sm:$0xff]
    %v701 = vld [vmem:[%s671 + $0xe8] sm:$0xff]
    %v702 = vld [vmem:[%s671 + $0xf0] sm:$0xff]
    %v703 = vld [vmem:[%s671 + $0xf8] sm:$0xff]
    %s704 = scalar_lea.vmem [#allocation8], 2
    %v705 = vld [vmem:[%s704] ss:$4 sm:$0x3]
    %706 = vmatpush.msra.mxu0 %v702
    %707 = vmatpush.msra.mxu0 %v700
    %708 = vmatpush.msra.mxu0 %v698
    %709 = vmatpush.msra.mxu0 %v696
    %710 = vmatpush.msra.mxu0 %v694
    %711 = vmatpush.msra.mxu0 %v692
    %712 = vmatpush.msra.mxu0 %v690
    %713 = vmatpush.msra.mxu0 %v688
    %714 = vmatpush.msra.mxu0 %v686
    %715 = vmatpush.msra.mxu0 %v684
    %716 = vmatpush.msra.mxu0 %v682
    %717 = vmatpush.msra.mxu0 %v680
    %718 = vmatpush.msra.mxu0 %v678
    %719 = vmatpush.msra.mxu0 %v676
    %720 = vmatpush.msra.mxu0 %v674
    %721 = vmatpush.msra.mxu0 %v672
    %722 = vmatmul.f32.gmra.mxu0 %v636
    %v723 = vpop.f32.mrf.mxu0
    %v724 = vadd.f32 0.0, %v723
    %725 = vmatmul.f32.gmra.mxu0 %v637
    %v726 = vpop.f32.mrf.mxu0
    %v727 = vadd.f32 0.0, %v726
    %728 = vdwg.mxu0
    %729 = vmatpush.msra.mxu0 %v703
    %730 = vmatpush.msra.mxu0 %v701
    %731 = vmatpush.msra.mxu0 %v699
    %732 = vmatpush.msra.mxu0 %v697
    %733 = vmatpush.msra.mxu0 %v695
    %734 = vmatpush.msra.mxu0 %v693
    %735 = vmatpush.msra.mxu0 %v691
    %736 = vmatpush.msra.mxu0 %v689
    %737 = vmatpush.msra.mxu0 %v687
    %738 = vmatpush.msra.mxu0 %v685
    %739 = vmatpush.msra.mxu0 %v683
    %740 = vmatpush.msra.mxu0 %v681
    %741 = vmatpush.msra.mxu0 %v679
    %742 = vmatpush.msra.mxu0 %v677
    %743 = vmatpush.msra.mxu0 %v675
    %744 = vmatpush.msra.mxu0 %v673
    %745 = vmatmul.f32.gmra.mxu0 %v636
    %v746 = vpop.f32.mrf.mxu0
    %v747 = vadd.f32 0.0, %v746
    %748 = vmatmul.f32.gmra.mxu0 %v637
    %v749 = vpop.f32.mrf.mxu0
    %v750 = vadd.f32 0.0, %v749
    %751 = vdwg.mxu0
    %v753 = vperm.slane %v705, 0
    %v754 = vperm.slane %v705, 1
    %v757 = vsub.f32 %v753, %v724
    %v758 = vsub.f32 %v754, %v747
    %v759 = vsub.f32 %v753, %v727
    %v760 = vsub.f32 %v754, %v750
    %v761 = vmin.f32 %v757, %v758
    %762 = vmin.xlane.f32.xlu0 %v761
    %v763 = vpop.xlane.xlu0 %762
    %v764 = vmin.f32 %v759, %v760
    %765 = vmin.xlane.f32.xlu0 %v764
    %v766 = vpop.xlane.xlu0 %765
    %vm767 = vcmp.le.f32.partialorder %v757, %v763
    %vm768 = vcmp.le.f32.partialorder %v758, %v763
    %vm769 = vcmp.le.f32.partialorder %v759, %v766
    %vm770 = vcmp.le.f32.partialorder %v760, %v766
    %v771 = vsel %vm767, %v99, 256
    %v772 = vsel %vm768, %v100, 256
    %v773 = vsel %vm769, %v99, 256
    %v774 = vsel %vm770, %v100, 256
    %vm775 = vcmp.lt.s32.totalorder %v771, %v772
    %v776 = vsel %vm775, %v771, %v772
    %v777 = vand.u32 %v776, 65535
    %v778 = vshra.s32 %v776, 16
    %v779 = vcvt.s32.f32 %v777
    %v780 = vcvt.s32.f32 %v778
    %781 = vmin.xlane.f32.xlu0 %v780
    %v782 = vpop.xlane.xlu0 %781
    %vm783 = vcmp.eq.f32.partialorder %v780, %v782
    %v784 = vsel %vm783, %v779, inf
    %785 = vmin.xlane.f32.xlu0 %v784
    %v786 = vpop.xlane.xlu0 %785
    %v787 = vcvt.f32.s32 %v786
    %v788 = vcvt.f32.s32 %v782
    %v789 = vshll.u32 %v788, 16
    %v790 = vadd.s32 %v789, %v787
    %vm791 = vcmp.lt.s32.totalorder %v773, %v774
    %v792 = vsel %vm791, %v773, %v774
    %v793 = vand.u32 %v792, 65535
    %v794 = vshra.s32 %v792, 16
    %v795 = vcvt.s32.f32 %v793
    %v796 = vcvt.s32.f32 %v794
    %797 = vmin.xlane.f32.xlu0 %v796
    %v798 = vpop.xlane.xlu0 %797
    %vm799 = vcmp.eq.f32.partialorder %v796, %v798
    %v800 = vsel %vm799, %v795, inf
    %801 = vmin.xlane.f32.xlu0 %v800
    %v802 = vpop.xlane.xlu0 %801
    %v803 = vcvt.f32.s32 %v802
    %v804 = vcvt.f32.s32 %v798
    %v805 = vshll.u32 %v804, 16
    %v806 = vadd.s32 %v805, %v803
    %vm807 = vcmp.eq.s32.totalorder %v99, %v790
    %vm808 = vcmp.eq.s32.totalorder %v100, %v790
    %vm809 = vcmp.eq.s32.totalorder %v99, %v806
    %vm810 = vcmp.eq.s32.totalorder %v100, %v806
    %v811 = vsel %vm807, %v96, 0.0
    %v812 = vsel %vm808, %v96, 0.0
    %v813 = vsel %vm809, %v97, 0.0
    %v814 = vsel %vm810, %v97, 0.0
    %815 = vmatpush.msra.mxu0 %v654
    %816 = vmatpush.msra.mxu0 %v653
    %817 = vmatpush.msra.mxu0 %v652
    %818 = vmatpush.msra.mxu0 %v651
    %819 = vmatpush.msra.mxu0 %v650
    %820 = vmatpush.msra.mxu0 %v649
    %821 = vmatpush.msra.mxu0 %v648
    %822 = vmatpush.msra.mxu0 %v647
    %823 = vmatpush.msra.mxu0 %v646
    %824 = vmatpush.msra.mxu0 %v645
    %825 = vmatpush.msra.mxu0 %v644
    %826 = vmatpush.msra.mxu0 %v643
    %827 = vmatpush.msra.mxu0 %v642
    %828 = vmatpush.msra.mxu0 %v641
    %829 = vmatpush.msra.mxu0 %v640
    %830 = vmatpush.msra.mxu0 %v639
    %831 = vmatmul.f32.gmra.mxu0 %v811
    %v832 = vpop.f32.mrf.mxu0
    %v833 = vadd.f32 0.0, %v832
    %834 = vmatmul.f32.gmra.mxu0 %v813
    %v835 = vpop.f32.mrf.mxu0
    %v836 = vadd.f32 0.0, %v835
    %837 = vdwg.mxu0
    %838 = vmatpush.msra.mxu0 %v670
    %839 = vmatpush.msra.mxu0 %v669
    %840 = vmatpush.msra.mxu0 %v668
    %841 = vmatpush.msra.mxu0 %v667
    %842 = vmatpush.msra.mxu0 %v666
    %843 = vmatpush.msra.mxu0 %v665
    %844 = vmatpush.msra.mxu0 %v664
    %845 = vmatpush.msra.mxu0 %v663
    %846 = vmatpush.msra.mxu0 %v662
    %847 = vmatpush.msra.mxu0 %v661
    %848 = vmatpush.msra.mxu0 %v660
    %849 = vmatpush.msra.mxu0 %v659
    %850 = vmatpush.msra.mxu0 %v658
    %851 = vmatpush.msra.mxu0 %v657
    %852 = vmatpush.msra.mxu0 %v656
    %853 = vmatpush.msra.mxu0 %v655
    %854 = vmatmul.f32.gmra.mxu0 %v812
    %v855 = vpop.f32.mrf.mxu0
    %v856 = vadd.f32 %v833, %v855
    %857 = vmatmul.f32.gmra.mxu0 %v814
    %v858 = vpop.f32.mrf.mxu0
    %v859 = vadd.f32 %v836, %v858
    %860 = vdwg.mxu0
    %v861 = vsub.f32 %v856, %v636
    %v862 = vsub.f32 %v859, %v637
    %vm863 = vcmask 23568
    %864 = vst.msk [vmem:[%s5] sm:$0xff] %vm863, %v790
    %865 = vst.msk [vmem:[%s5 + $0x8] sm:$0xff] %vm863, %v806
    %v866 = vadd.f32 %v811, %v813
    %v867 = vrot.slane %v866, 4
    %v868 = vadd.f32 %v866, %v867
    %v869 = vrot.slane %v868, 2
    %v870 = vadd.f32 %v868, %v869
    %v871 = vrot.slane %v870, 1
    %v872 = vadd.f32 %v870, %v871
    %v873 = vadd.f32 %v812, %v814
    %v874 = vrot.slane %v873, 4
    %v875 = vadd.f32 %v873, %v874
    %v876 = vrot.slane %v875, 2
    %v877 = vadd.f32 %v875, %v876
    %v878 = vrot.slane %v877, 1
    %v879 = vadd.f32 %v877, %v878
    %v882 = vrot.slane %v879, 7
    %v883 = vsel %vm343, %v872, %v882
    %s885 = scalar_lea.vmem %s6, 2
    %886 = vst.msk [vmem:[%s885] ss:$4 sm:$0x3] %vm349, %v883
    %v887 = vmul.f32 %v861, %v861
    %v888 = vmul.f32 %v862, %v862
    %v889 = vadd.f32 %v887, %v888
    %890 = vadd.xlane.f32.xlu0 %v889
    %v891 = vpop.xlane.xlu0 %890
    %v892 = vrot.slane %v891, 4
    %v893 = vadd.f32 %v891, %v892
    %v894 = vrot.slane %v893, 2
    %v895 = vadd.f32 %v893, %v894
    %v896 = vrot.slane %v895, 1
    %v897 = vadd.f32 %v895, %v896
    %s898 = vtos %v897
    %v899 = vstv %s898
    %s900 = scalar_lea.vmem %s7, 2
    %901 = vst.msk [vmem:[%s900] sm:$0x1] %vm364, %v899
    %v902 = vadd.f32 %v634, %v856
    %v903 = vadd.f32 %v635, %v859
    %v904 = vsub.f32 %v636, %v856
    %v905 = vsub.f32 %v637, %v859
    %s906 = scalar_lea.vmem [#allocation5], 768
    %v907 = vld [vmem:[%s906] sm:$0xff]
    %v908 = vld [vmem:[%s906 + $0x8] sm:$0xff]
    %v909 = vld [vmem:[%s906 + $0x10] sm:$0xff]
    %v910 = vld [vmem:[%s906 + $0x18] sm:$0xff]
    %v911 = vld [vmem:[%s906 + $0x20] sm:$0xff]
    %v912 = vld [vmem:[%s906 + $0x28] sm:$0xff]
    %v913 = vld [vmem:[%s906 + $0x30] sm:$0xff]
    %v914 = vld [vmem:[%s906 + $0x38] sm:$0xff]
    %v915 = vld [vmem:[%s906 + $0x40] sm:$0xff]
    %v916 = vld [vmem:[%s906 + $0x48] sm:$0xff]
    %v917 = vld [vmem:[%s906 + $0x50] sm:$0xff]
    %v918 = vld [vmem:[%s906 + $0x58] sm:$0xff]
    %v919 = vld [vmem:[%s906 + $0x60] sm:$0xff]
    %v920 = vld [vmem:[%s906 + $0x68] sm:$0xff]
    %v921 = vld [vmem:[%s906 + $0x70] sm:$0xff]
    %v922 = vld [vmem:[%s906 + $0x78] sm:$0xff]
    %v923 = vld [vmem:[%s906 + $0x80] sm:$0xff]
    %v924 = vld [vmem:[%s906 + $0x88] sm:$0xff]
    %v925 = vld [vmem:[%s906 + $0x90] sm:$0xff]
    %v926 = vld [vmem:[%s906 + $0x98] sm:$0xff]
    %v927 = vld [vmem:[%s906 + $0xa0] sm:$0xff]
    %v928 = vld [vmem:[%s906 + $0xa8] sm:$0xff]
    %v929 = vld [vmem:[%s906 + $0xb0] sm:$0xff]
    %v930 = vld [vmem:[%s906 + $0xb8] sm:$0xff]
    %v931 = vld [vmem:[%s906 + $0xc0] sm:$0xff]
    %v932 = vld [vmem:[%s906 + $0xc8] sm:$0xff]
    %v933 = vld [vmem:[%s906 + $0xd0] sm:$0xff]
    %v934 = vld [vmem:[%s906 + $0xd8] sm:$0xff]
    %v935 = vld [vmem:[%s906 + $0xe0] sm:$0xff]
    %v936 = vld [vmem:[%s906 + $0xe8] sm:$0xff]
    %v937 = vld [vmem:[%s906 + $0xf0] sm:$0xff]
    %v938 = vld [vmem:[%s906 + $0xf8] sm:$0xff]
    %s939 = scalar_lea.vmem [#allocation7], 768
    %v940 = vld [vmem:[%s939] sm:$0xff]
    %v941 = vld [vmem:[%s939 + $0x8] sm:$0xff]
    %v942 = vld [vmem:[%s939 + $0x10] sm:$0xff]
    %v943 = vld [vmem:[%s939 + $0x18] sm:$0xff]
    %v944 = vld [vmem:[%s939 + $0x20] sm:$0xff]
    %v945 = vld [vmem:[%s939 + $0x28] sm:$0xff]
    %v946 = vld [vmem:[%s939 + $0x30] sm:$0xff]
    %v947 = vld [vmem:[%s939 + $0x38] sm:$0xff]
    %v948 = vld [vmem:[%s939 + $0x40] sm:$0xff]
    %v949 = vld [vmem:[%s939 + $0x48] sm:$0xff]
    %v950 = vld [vmem:[%s939 + $0x50] sm:$0xff]
    %v951 = vld [vmem:[%s939 + $0x58] sm:$0xff]
    %v952 = vld [vmem:[%s939 + $0x60] sm:$0xff]
    %v953 = vld [vmem:[%s939 + $0x68] sm:$0xff]
    %v954 = vld [vmem:[%s939 + $0x70] sm:$0xff]
    %v955 = vld [vmem:[%s939 + $0x78] sm:$0xff]
    %v956 = vld [vmem:[%s939 + $0x80] sm:$0xff]
    %v957 = vld [vmem:[%s939 + $0x88] sm:$0xff]
    %v958 = vld [vmem:[%s939 + $0x90] sm:$0xff]
    %v959 = vld [vmem:[%s939 + $0x98] sm:$0xff]
    %v960 = vld [vmem:[%s939 + $0xa0] sm:$0xff]
    %v961 = vld [vmem:[%s939 + $0xa8] sm:$0xff]
    %v962 = vld [vmem:[%s939 + $0xb0] sm:$0xff]
    %v963 = vld [vmem:[%s939 + $0xb8] sm:$0xff]
    %v964 = vld [vmem:[%s939 + $0xc0] sm:$0xff]
    %v965 = vld [vmem:[%s939 + $0xc8] sm:$0xff]
    %v966 = vld [vmem:[%s939 + $0xd0] sm:$0xff]
    %v967 = vld [vmem:[%s939 + $0xd8] sm:$0xff]
    %v968 = vld [vmem:[%s939 + $0xe0] sm:$0xff]
    %v969 = vld [vmem:[%s939 + $0xe8] sm:$0xff]
    %v970 = vld [vmem:[%s939 + $0xf0] sm:$0xff]
    %v971 = vld [vmem:[%s939 + $0xf8] sm:$0xff]
    %s972 = scalar_lea.vmem [#allocation8], 3
    %v973 = vld [vmem:[%s972] ss:$4 sm:$0x3]
    %974 = vmatpush.msra.mxu0 %v970
    %975 = vmatpush.msra.mxu0 %v968
    %976 = vmatpush.msra.mxu0 %v966
    %977 = vmatpush.msra.mxu0 %v964
    %978 = vmatpush.msra.mxu0 %v962
    %979 = vmatpush.msra.mxu0 %v960
    %980 = vmatpush.msra.mxu0 %v958
    %981 = vmatpush.msra.mxu0 %v956
    %982 = vmatpush.msra.mxu0 %v954
    %983 = vmatpush.msra.mxu0 %v952
    %984 = vmatpush.msra.mxu0 %v950
    %985 = vmatpush.msra.mxu0 %v948
    %986 = vmatpush.msra.mxu0 %v946
    %987 = vmatpush.msra.mxu0 %v944
    %988 = vmatpush.msra.mxu0 %v942
    %989 = vmatpush.msra.mxu0 %v940
    %990 = vmatmul.f32.gmra.mxu0 %v904
    %v991 = vpop.f32.mrf.mxu0
    %v992 = vadd.f32 0.0, %v991
    %993 = vmatmul.f32.gmra.mxu0 %v905
    %v994 = vpop.f32.mrf.mxu0
    %v995 = vadd.f32 0.0, %v994
    %996 = vdwg.mxu0
    %997 = vmatpush.msra.mxu0 %v971
    %998 = vmatpush.msra.mxu0 %v969
    %999 = vmatpush.msra.mxu0 %v967
    %1000 = vmatpush.msra.mxu0 %v965
    %1001 = vmatpush.msra.mxu0 %v963
    %1002 = vmatpush.msra.mxu0 %v961
    %1003 = vmatpush.msra.mxu0 %v959
    %1004 = vmatpush.msra.mxu0 %v957
    %1005 = vmatpush.msra.mxu0 %v955
    %1006 = vmatpush.msra.mxu0 %v953
    %1007 = vmatpush.msra.mxu0 %v951
    %1008 = vmatpush.msra.mxu0 %v949
    %1009 = vmatpush.msra.mxu0 %v947
    %1010 = vmatpush.msra.mxu0 %v945
    %1011 = vmatpush.msra.mxu0 %v943
    %1012 = vmatpush.msra.mxu0 %v941
    %1013 = vmatmul.f32.gmra.mxu0 %v904
    %v1014 = vpop.f32.mrf.mxu0
    %v1015 = vadd.f32 0.0, %v1014
    %1016 = vmatmul.f32.gmra.mxu0 %v905
    %v1017 = vpop.f32.mrf.mxu0
    %v1018 = vadd.f32 0.0, %v1017
    %1019 = vdwg.mxu0
    %v1021 = vperm.slane %v973, 0
    %v1022 = vperm.slane %v973, 1
    %v1025 = vsub.f32 %v1021, %v992
    %v1026 = vsub.f32 %v1022, %v1015
    %v1027 = vsub.f32 %v1021, %v995
    %v1028 = vsub.f32 %v1022, %v1018
    %v1029 = vmin.f32 %v1025, %v1026
    %1030 = vmin.xlane.f32.xlu0 %v1029
    %v1031 = vpop.xlane.xlu0 %1030
    %v1032 = vmin.f32 %v1027, %v1028
    %1033 = vmin.xlane.f32.xlu0 %v1032
    %v1034 = vpop.xlane.xlu0 %1033
    %vm1035 = vcmp.le.f32.partialorder %v1025, %v1031
    %vm1036 = vcmp.le.f32.partialorder %v1026, %v1031
    %vm1037 = vcmp.le.f32.partialorder %v1027, %v1034
    %vm1038 = vcmp.le.f32.partialorder %v1028, %v1034
    %v1039 = vsel %vm1035, %v99, 256
    %v1040 = vsel %vm1036, %v100, 256
    %v1041 = vsel %vm1037, %v99, 256
    %v1042 = vsel %vm1038, %v100, 256
    %vm1043 = vcmp.lt.s32.totalorder %v1039, %v1040
    %v1044 = vsel %vm1043, %v1039, %v1040
    %v1045 = vand.u32 %v1044, 65535
    %v1046 = vshra.s32 %v1044, 16
    %v1047 = vcvt.s32.f32 %v1045
    %v1048 = vcvt.s32.f32 %v1046
    %1049 = vmin.xlane.f32.xlu0 %v1048
    %v1050 = vpop.xlane.xlu0 %1049
    %vm1051 = vcmp.eq.f32.partialorder %v1048, %v1050
    %v1052 = vsel %vm1051, %v1047, inf
    %1053 = vmin.xlane.f32.xlu0 %v1052
    %v1054 = vpop.xlane.xlu0 %1053
    %v1055 = vcvt.f32.s32 %v1054
    %v1056 = vcvt.f32.s32 %v1050
    %v1057 = vshll.u32 %v1056, 16
    %v1058 = vadd.s32 %v1057, %v1055
    %vm1059 = vcmp.lt.s32.totalorder %v1041, %v1042
    %v1060 = vsel %vm1059, %v1041, %v1042
    %v1061 = vand.u32 %v1060, 65535
    %v1062 = vshra.s32 %v1060, 16
    %v1063 = vcvt.s32.f32 %v1061
    %v1064 = vcvt.s32.f32 %v1062
    %1065 = vmin.xlane.f32.xlu0 %v1064
    %v1066 = vpop.xlane.xlu0 %1065
    %vm1067 = vcmp.eq.f32.partialorder %v1064, %v1066
    %v1068 = vsel %vm1067, %v1063, inf
    %1069 = vmin.xlane.f32.xlu0 %v1068
    %v1070 = vpop.xlane.xlu0 %1069
    %v1071 = vcvt.f32.s32 %v1070
    %v1072 = vcvt.f32.s32 %v1066
    %v1073 = vshll.u32 %v1072, 16
    %v1074 = vadd.s32 %v1073, %v1071
    %vm1075 = vcmp.eq.s32.totalorder %v99, %v1058
    %vm1076 = vcmp.eq.s32.totalorder %v100, %v1058
    %vm1077 = vcmp.eq.s32.totalorder %v99, %v1074
    %vm1078 = vcmp.eq.s32.totalorder %v100, %v1074
    %v1079 = vsel %vm1075, %v96, 0.0
    %v1080 = vsel %vm1076, %v96, 0.0
    %v1081 = vsel %vm1077, %v97, 0.0
    %v1082 = vsel %vm1078, %v97, 0.0
    %1083 = vmatpush.msra.mxu0 %v922
    %1084 = vmatpush.msra.mxu0 %v921
    %1085 = vmatpush.msra.mxu0 %v920
    %1086 = vmatpush.msra.mxu0 %v919
    %1087 = vmatpush.msra.mxu0 %v918
    %1088 = vmatpush.msra.mxu0 %v917
    %1089 = vmatpush.msra.mxu0 %v916
    %1090 = vmatpush.msra.mxu0 %v915
    %1091 = vmatpush.msra.mxu0 %v914
    %1092 = vmatpush.msra.mxu0 %v913
    %1093 = vmatpush.msra.mxu0 %v912
    %1094 = vmatpush.msra.mxu0 %v911
    %1095 = vmatpush.msra.mxu0 %v910
    %1096 = vmatpush.msra.mxu0 %v909
    %1097 = vmatpush.msra.mxu0 %v908
    %1098 = vmatpush.msra.mxu0 %v907
    %1099 = vmatmul.f32.gmra.mxu0 %v1079
    %v1100 = vpop.f32.mrf.mxu0
    %v1101 = vadd.f32 0.0, %v1100
    %1102 = vmatmul.f32.gmra.mxu0 %v1081
    %v1103 = vpop.f32.mrf.mxu0
    %v1104 = vadd.f32 0.0, %v1103
    %1105 = vdwg.mxu0
    %1106 = vmatpush.msra.mxu0 %v938
    %1107 = vmatpush.msra.mxu0 %v937
    %1108 = vmatpush.msra.mxu0 %v936
    %1109 = vmatpush.msra.mxu0 %v935
    %1110 = vmatpush.msra.mxu0 %v934
    %1111 = vmatpush.msra.mxu0 %v933
    %1112 = vmatpush.msra.mxu0 %v932
    %1113 = vmatpush.msra.mxu0 %v931
    %1114 = vmatpush.msra.mxu0 %v930
    %1115 = vmatpush.msra.mxu0 %v929
    %1116 = vmatpush.msra.mxu0 %v928
    %1117 = vmatpush.msra.mxu0 %v927
    %1118 = vmatpush.msra.mxu0 %v926
    %1119 = vmatpush.msra.mxu0 %v925
    %1120 = vmatpush.msra.mxu0 %v924
    %1121 = vmatpush.msra.mxu0 %v923
    %1122 = vmatmul.f32.gmra.mxu0 %v1080
    %v1123 = vpop.f32.mrf.mxu0
    %v1124 = vadd.f32 %v1101, %v1123
    %1125 = vmatmul.f32.gmra.mxu0 %v1082
    %v1126 = vpop.f32.mrf.mxu0
    %v1127 = vadd.f32 %v1104, %v1126
    %1128 = vdwg.mxu0
    %v1129 = vsub.f32 %v1124, %v904
    %v1130 = vsub.f32 %v1127, %v905
    %vm1131 = vcmask 31768
    %1132 = vst.msk [vmem:[%s5] sm:$0xff] %vm1131, %v1058
    %1133 = vst.msk [vmem:[%s5 + $0x8] sm:$0xff] %vm1131, %v1074
    %v1134 = vadd.f32 %v1079, %v1081
    %v1135 = vrot.slane %v1134, 4
    %v1136 = vadd.f32 %v1134, %v1135
    %v1137 = vrot.slane %v1136, 2
    %v1138 = vadd.f32 %v1136, %v1137
    %v1139 = vrot.slane %v1138, 1
    %v1140 = vadd.f32 %v1138, %v1139
    %v1141 = vadd.f32 %v1080, %v1082
    %v1142 = vrot.slane %v1141, 4
    %v1143 = vadd.f32 %v1141, %v1142
    %v1144 = vrot.slane %v1143, 2
    %v1145 = vadd.f32 %v1143, %v1144
    %v1146 = vrot.slane %v1145, 1
    %v1147 = vadd.f32 %v1145, %v1146
    %v1150 = vrot.slane %v1147, 7
    %v1151 = vsel %vm343, %v1140, %v1150
    %s1153 = scalar_lea.vmem %s6, 3
    %1154 = vst.msk [vmem:[%s1153] ss:$4 sm:$0x3] %vm349, %v1151
    %v1155 = vmul.f32 %v1129, %v1129
    %v1156 = vmul.f32 %v1130, %v1130
    %v1157 = vadd.f32 %v1155, %v1156
    %1158 = vadd.xlane.f32.xlu0 %v1157
    %v1159 = vpop.xlane.xlu0 %1158
    %v1160 = vrot.slane %v1159, 4
    %v1161 = vadd.f32 %v1159, %v1160
    %v1162 = vrot.slane %v1161, 2
    %v1163 = vadd.f32 %v1161, %v1162
    %v1164 = vrot.slane %v1163, 1
    %v1165 = vadd.f32 %v1163, %v1164
    %s1166 = vtos %v1165
    %v1167 = vstv %s1166
    %s1168 = scalar_lea.vmem %s7, 3
    %1169 = vst.msk [vmem:[%s1168] sm:$0x1] %vm364, %v1167
    %v1170 = vadd.f32 %v902, %v1124
    %v1171 = vadd.f32 %v903, %v1127
    %1172 = vst [vmem:[#allocation10] sm:$0xff] %v1170
    %1173 = vst [vmem:[#allocation10 + $0x8] sm:$0xff] %v1171
    // Predicated region
    $region34: #{_rvq_forward.1} parent=1 // pred_check
      _
    $region35: #{_rvq_forward.1} parent=1 // pred_check_branch
      %1175 = sbr.rel (0) target = $region37
    $region36: #{_rvq_forward.1} parent=1 // pred_region
      %1177 = vsyncadd [#allocation4], 0
      %s1178 = sshll.u32 [#allocation10], 4
      %s1179 = int_to_ptr.vmem [resolvable:$true] %s1178
      %s1180 = sshll.u32 %s4, 4
      %s1181 = int_to_ptr.hbm [resolvable:$true] %s1180
      %1186 = dma.vmem_to_hbm [thread:$0]  %s1179, 256, %s1181, [#allocation4], 128, 128, 8
    $region37: #{_rvq_forward.1} parent=1 // pred_fallthru
      _
    // Predicated region
    $region38: #{_rvq_forward.1} parent=1 // pred_check
      _
    $region39: #{_rvq_forward.1} parent=1 // pred_check_branch
      %1188 = sbr.rel (0) target = $region41
    $region40: #{_rvq_forward.1} parent=1 // pred_region
      _
    $region41: #{_rvq_forward.1} parent=1 // pred_fallthru
      _
    // Predicated region
    $region42: #{_rvq_forward.1} parent=1 // pred_check
      _
    $region43: #{_rvq_forward.1} parent=1 // pred_check_branch
      %1190 = sbr.rel (0) target = $region45
    $region44: #{_rvq_forward.1} parent=1 // pred_region
      _
    $region45: #{_rvq_forward.1} parent=1 // pred_fallthru
      _
    // Predicated region
    $region46: #{_rvq_forward.1} parent=1 // pred_check
      _
    $region47: #{_rvq_forward.1} parent=1 // pred_check_branch
      %1192 = sbr.rel (0) target = $region49
    $region48: #{_rvq_forward.1} parent=1 // pred_region
      _
    $region49: #{_rvq_forward.1} parent=1 // pred_fallthru
      _
    // Predicated region
    $region50: #{_rvq_forward.1} parent=1 // pred_check
      _
    $region51: #{_rvq_forward.1} parent=1 // pred_check_branch
      %1194 = sbr.rel (0) target = $region53
    $region52: #{_rvq_forward.1} parent=1 // pred_region
      %1196 = dma.done [#allocation4], 256
    $region53: #{_rvq_forward.1} parent=1 // pred_fallthru
      _
    // Predicated region
    $region54: #{_rvq_forward.1} parent=1 // pred_check
      _
    $region55: #{_rvq_forward.1} parent=1 // pred_check_branch
      %1198 = sbr.rel (0) target = $region57
    $region56: #{_rvq_forward.1} parent=1 // pred_region
      _
    $region57: #{_rvq_forward.1} parent=1 // pred_fallthru
      _
    // Predicated region
    $region58: #{_rvq_forward.1} parent=1 // pred_check
      _
    $region59: #{_rvq_forward.1} parent=1 // pred_check_branch
      %1200 = sbr.rel (0) target = $region61
    $region60: #{_rvq_forward.1} parent=1 // pred_region
      _
    $region61: #{_rvq_forward.1} parent=1 // pred_fallthru
      _
    // Predicated region
    $region62: #{_rvq_forward.1} parent=1 // pred_check
      _
    $region63: #{_rvq_forward.1} parent=1 // pred_check_branch
      %1202 = sbr.rel (0) target = $region65
    $region64: #{_rvq_forward.1} parent=1 // pred_region
      _
    $region65: #{_rvq_forward.1} parent=1 // pred_fallthru
      _
    %1203 = vsyncpa [#allocation3], 1
    %1204 = vsyncpa [#allocation6], 1
    %1205 = vsyncpa [#allocation9], 1
    %1206 = vsyncpa [#allocation4], 1

</llo_original>
